<compile_context>
chip_gen: v6e
topology: v6e:2x2x1
jax: 0.10.0
libtpu: 0.0.40
codegen_flags: <defaults>
</compile_context>

<pallas_src>
import jax
import jax.numpy as jnp
from jax.experimental import pallas as pl
from jax.experimental.pallas import tpu as pltpu


# --------------------------------- kernel ----------------------------------
def _make_resblock_kernel(N, H, W, C, eps=1e-5):
    NH = N * H
    WC = W * C

    def kernel(x_ref, w1_ref, w2_ref, w3_ref, a_ref, gb_ref, o_ref):
        x = x_ref[...].astype(jnp.float32)                      # (NH, WC) lane-dense

        # Hoisted full-width boundary masks, reused by all three convs.
        row = jax.lax.broadcasted_iota(jnp.int32, (NH, WC), 0)
        m_top = ((row % H) != 0).astype(jnp.float32)            # zero the h==0   "up" tap
        m_bot = ((row % H) != (H - 1)).astype(jnp.float32)      # zero the h==H-1 "down" tap

        gb = gb_ref[...]                                        # (8, WC): g1,b1,g2,b2,g3,b3,0,0
        avg = a_ref[...]                                        # (WC, WC) channel-averaging

        def conv3x3(v, w_ref):
            # Vertical taps: static row shift + boundary mask (zero padding rows);
            # horizontal taps are folded into the banded weight blocks, so each ky tap
            # group is one MXU dot accumulating into the same f32 result (no im2col copy).
            up = m_top * jnp.roll(v, 1, axis=0)                 # row h-1
            dn = m_bot * jnp.roll(v, -1, axis=0)                # row h+1
            acc = jnp.dot(up, w_ref[0], preferred_element_type=jnp.float32)
            acc = acc + jnp.dot(v, w_ref[1], preferred_element_type=jnp.float32)
            acc = acc + jnp.dot(dn, w_ref[2], preferred_element_type=jnp.float32)
            return acc

        def bn(v, g, b):
            # Single-pass training-mode BatchNorm2d statistics (per channel over N,H,W):
            # column sums, then ONE fused (2,WC)x(WC,WC) channel-averaging dot.
            s = jnp.sum(v, axis=0, keepdims=True)               # (1, WC)
            sq = jnp.sum(v * v, axis=0, keepdims=True)          # (1, WC)
            stats = jnp.dot(jnp.concatenate([s, sq], axis=0), avg,
                            preferred_element_type=jnp.float32)  # (2, WC)
            mean = stats[0:1, :]
            var = jnp.maximum(stats[1:2, :] - mean * mean, 0.0)  # guard cancellation
            scale = jax.lax.rsqrt(var + eps) * g
            shift = b - mean * scale
            return v * scale + shift

        v = jnp.maximum(bn(conv3x3(x, w1_ref), gb[0:1, :], gb[1:2, :]), 0.0)
        v = jnp.maximum(bn(conv3x3(v, w2_ref), gb[2:3, :], gb[3:4, :]), 0.0)
        v = bn(conv3x3(v, w3_ref), gb[4:5, :], gb[5:6, :])
        o_ref[...] = jnp.maximum(v + x, 0.0).astype(o_ref.dtype)

    return kernel


# --------------------------------- wrapper ---------------------------------
def _banded_conv_weight(w_oihw, W):
    """PyTorch OIHW (Cout, Cin, 3, 3) -> (3, W*Cin, W*Cout) banded blocks, one per ky.

    Block ky maps the vertically-shifted activation row (h+ky-1) to the output row; the
    horizontal (kx) taps become a banded block-Toeplitz structure, so each ky group is a
    single matmul against the lane-dense (N*H, W*Cin) activation matrix.
    """
    Cout, Cin = int(w_oihw.shape[0]), int(w_oihw.shape[1])
    w_oihw = w_oihw.astype(jnp.float32)
    wi = jnp.arange(W)[:, None]     # input  column w_in
    wo = jnp.arange(W)[None, :]     # output column w_out
    blocks = []
    for ky in range(3):
        m = jnp.zeros((W, Cin, W, Cout), jnp.float32)
        for kx in range(3):
            band = (wi == wo + (kx - 1)).astype(jnp.float32)    # (W, W) shift band
            wk = jnp.transpose(w_oihw[:, :, ky, kx], (1, 0))    # (Cin, Cout)
            m = m + band[:, None, :, None] * wk[None, :, None, :]
        blocks.append(m.reshape(W * Cin, W * Cout))
    return jnp.stack(blocks, axis=0)                            # (3, W*Cin, W*Cout)


def resblock_forward(x_nchw, w1, w2, w3, g1, b1, g2, b2, g3, b3):
    """x_nchw: (N, C, H, W); w*: (Cout, Cin, 3, 3) PyTorch OIHW; g*/b*: (C,)."""
    N, C, H, W = x_nchw.shape
    assert w1.shape[0] == C, "residual add requires in_channels == out_channels"
    NH, WC = N * H, W * C

    # lane-dense activation presentation: (N,C,H,W) -> (N,H,W,C) -> (N*H, W*C)
    # TODO(synk): at scale keep activations lane-dense between blocks instead of paying
    # this transpose (a full extra HBM read+write) on every call.
    x2d = jnp.transpose(x_nchw, (0, 2, 3, 1)).reshape(NH, WC)

    wb = [_banded_conv_weight(w, W) for w in (w1, w2, w3)]      # (3, WC, WC) each

    # channel-averaging matrix: A[w'*C+c', w*C+c] = [c'==c] / (N*H*W)
    cc = jnp.arange(WC) % C
    A = (cc[:, None] == cc[None, :]).astype(jnp.float32) / float(N * H * W)

    # pack gamma/beta rows into one aligned (8, WC) operand: g1,b1,g2,b2,g3,b3,pad,pad
    tile_row = lambda v: jnp.tile(v.astype(jnp.float32).reshape(1, C), (1, W))
    gb = jnp.concatenate(
        [tile_row(t) for t in (g1, b1, g2, b2, g3, b3)]
        + [jnp.zeros((2, WC), jnp.float32)], axis=0)            # (8, WC)

    kernel = _make_resblock_kernel(N, H, W, C)

    out2d = pl.pallas_call(
        kernel,
        out_shape=jax.ShapeDtypeStruct((NH, WC), x_nchw.dtype),
        grid=(1,),
        in_specs=[
            pl.BlockSpec((NH, WC), lambda i: (0, 0)),           # x (lane-dense)
            pl.BlockSpec((3, WC, WC), lambda i: (0, 0, 0)),     # conv1 banded blocks
            pl.BlockSpec((3, WC, WC), lambda i: (0, 0, 0)),     # conv2 banded blocks
            pl.BlockSpec((3, WC, WC), lambda i: (0, 0, 0)),     # conv3 banded blocks
            pl.BlockSpec((WC, WC), lambda i: (0, 0)),           # channel-avg matrix
            pl.BlockSpec((8, WC), lambda i: (0, 0)),            # packed gamma/beta
        ],
        out_specs=pl.BlockSpec((NH, WC), lambda i: (0, 0)),
        compiler_params=pltpu.CompilerParams(
            dimension_semantics=("arbitrary",),
            vmem_limit_bytes=32 * 1024 * 1024),
        # TODO(synk): tile NH into 'parallel' row-blocks + two-pass BatchNorm for
        # realistic sizes / v7x megacore; a single block keeps batch stats trivially global.
    )(x2d, wb[0], wb[1], wb[2], A, gb)

    return jnp.transpose(out2d.reshape(N, H, W, C), (0, 3, 1, 2))  # back to NCHW


# ---------------- pure-JAX reference (mirrors the PyTorch forward) ----------------
def _resblock_ref(x, w1, w2, w3, g1, b1, g2, b2, g3, b3, eps=1e-5):
    def conv(v, w):
        return jax.lax.conv_general_dilated(
            v, w, window_strides=(1, 1), padding=((1, 1), (1, 1)),
            dimension_numbers=('NCHW', 'OIHW', 'NCHW'))

    def bn(v, g, b):
        mean = jnp.mean(v, axis=(0, 2, 3), keepdims=True)
        var = jnp.mean((v - mean) ** 2, axis=(0, 2, 3), keepdims=True)
        return (v - mean) * jax.lax.rsqrt(var + eps) * g.reshape(1, -1, 1, 1) \
               + b.reshape(1, -1, 1, 1)

    res = x
    v = jax.nn.relu(bn(conv(x, w1), g1, b1))
    v = jax.nn.relu(bn(conv(v, w2), g2, b2))
    v = bn(conv(v, w3), g3, b3)
    return jax.nn.relu(v + res)


if __name__ == "__main__":
    # in_channels == out_channels (residual add requires it); W*C = 128 lane-dense
    N, C, H, W = 2, 8, 16, 16
    key = jax.random.PRNGKey(0)
    ks = jax.random.split(key, 10)

    x = jax.random.normal(ks[0], (N, C, H, W), jnp.float32)
    w1 = 0.1 * jax.random.normal(ks[1], (C, C, 3, 3), jnp.float32)
    w2 = 0.1 * jax.random.normal(ks[2], (C, C, 3, 3), jnp.float32)
    w3 = 0.1 * jax.random.normal(ks[3], (C, C, 3, 3), jnp.float32)
    g1 = 1.0 + 0.1 * jax.random.normal(ks[4], (C,), jnp.float32)
    b1 = 0.1 * jax.random.normal(ks[5], (C,), jnp.float32)
    g2 = 1.0 + 0.1 * jax.random.normal(ks[6], (C,), jnp.float32)
    b2 = 0.1 * jax.random.normal(ks[7], (C,), jnp.float32)
    g3 = 1.0 + 0.1 * jax.random.normal(ks[8], (C,), jnp.float32)
    b3 = 0.1 * jax.random.normal(ks[9], (C,), jnp.float32)

    out = resblock_forward(x, w1, w2, w3, g1, b1, g2, b2, g3, b3)
    out = jax.block_until_ready(out)

    ref = _resblock_ref(x, w1, w2, w3, g1, b1, g2, b2, g3, b3)
    assert out.shape == (N, C, H, W)
    max_err = float(jnp.max(jnp.abs(out - ref)))
    assert max_err < 2e-3, f"mismatch vs reference: max abs err {max_err}"
    print("KERNEL_OK")
</pallas_src>

<mosaic_0001>
module attributes {stable_mosaic.version = 11 : i64} {
  func.func @kernel(%arg0: i32, %arg1: memref<32x128xf32, #tpu.memory_space<vmem>>, %arg2: memref<3x128x128xf32, #tpu.memory_space<vmem>>, %arg3: memref<3x128x128xf32, #tpu.memory_space<vmem>>, %arg4: memref<3x128x128xf32, #tpu.memory_space<vmem>>, %arg5: memref<128x128xf32, #tpu.memory_space<vmem>>, %arg6: memref<8x128xf32, #tpu.memory_space<vmem>>, %arg7: memref<32x128xf32, #tpu.memory_space<vmem>>) attributes {dimension_semantics = [#tpu.dimension_semantics<arbitrary>], iteration_bounds = array<i64: 1>, scalar_prefetch = 0 : i64, scratch_operands = 0 : i64, tpu.core_type = #tpu.core_type<tc>, window_params = [{pipeline_mode = #tpu.pipeline_mode<synchronous>, transform_indices = @transform_0, window_bounds = array<i64: 32, 128>}, {pipeline_mode = #tpu.pipeline_mode<synchronous>, transform_indices = @transform_1, window_bounds = array<i64: 3, 128, 128>}, {pipeline_mode = #tpu.pipeline_mode<synchronous>, transform_indices = @transform_2, window_bounds = array<i64: 3, 128, 128>}, {pipeline_mode = #tpu.pipeline_mode<synchronous>, transform_indices = @transform_3, window_bounds = array<i64: 3, 128, 128>}, {pipeline_mode = #tpu.pipeline_mode<synchronous>, transform_indices = @transform_4, window_bounds = array<i64: 128, 128>}, {pipeline_mode = #tpu.pipeline_mode<synchronous>, transform_indices = @transform_5, window_bounds = array<i64: 8, 128>}, {pipeline_mode = #tpu.pipeline_mode<synchronous>, transform_indices = @transform_6, window_bounds = array<i64: 32, 128>}]} {
    %c0 = arith.constant 0 : index
    %c0_0 = arith.constant 0 : index
    %0 = vector.load %arg1[%c0, %c0_0] : memref<32x128xf32, #tpu.memory_space<vmem>>, vector<32x128xf32>
    %1 = tpu.iota {dimensions = array<i32: 0>} : vector<32x128xi32>
    %c16_i32 = arith.constant 16 : i32
    %c0_i32 = arith.constant 0 : i32
    %2 = arith.cmpi eq, %c16_i32, %c0_i32 : i32
    %c1_i32 = arith.constant 1 : i32
    %3 = arith.select %2, %c1_i32, %c16_i32 : i32
    %4 = vector.broadcast %3 : i32 to vector<32x128xi32>
    %5 = arith.remsi %1, %4 : vector<32x128xi32>
    %c0_i32_1 = arith.constant 0 : i32
    %6 = vector.broadcast %c0_i32_1 : i32 to vector<32x128xi32>
    %7 = arith.cmpi ne, %5, %6 : vector<32x128xi32>
    %c0_i32_2 = arith.constant 0 : i32
    %8 = vector.broadcast %c0_i32_2 : i32 to vector<32x128xi32>
    %9 = arith.cmpi slt, %5, %8 : vector<32x128xi32>
    %c0_i32_3 = arith.constant 0 : i32
    %10 = arith.cmpi slt, %3, %c0_i32_3 : i32
    %11 = vector.broadcast %10 : i1 to vector<32x128xi1>
    %12 = vector.broadcast %11 : vector<32x128xi1> to vector<32x128xi1>
    %13 = arith.xori %9, %12 : vector<32x128xi1>
    %14 = arith.andi %13, %7 : vector<32x128xi1>
    %15 = vector.broadcast %3 : i32 to vector<32x128xi32>
    %16 = arith.addi %5, %15 : vector<32x128xi32>
    %17 = arith.select %14, %16, %5 : vector<32x128xi1>, vector<32x128xi32>
    %c0_i32_4 = arith.constant 0 : i32
    %18 = vector.broadcast %c0_i32_4 : i32 to vector<32x128xi32>
    %19 = arith.cmpi ne, %17, %18 : vector<32x128xi32>
    %20 = arith.extui %19 : vector<32x128xi1> to vector<32x128xi32>
    %21 = arith.sitofp %20 : vector<32x128xi32> to vector<32x128xf32>
    %c16_i32_5 = arith.constant 16 : i32
    %c0_i32_6 = arith.constant 0 : i32
    %22 = arith.cmpi eq, %c16_i32_5, %c0_i32_6 : i32
    %c1_i32_7 = arith.constant 1 : i32
    %23 = arith.select %22, %c1_i32_7, %c16_i32_5 : i32
    %24 = vector.broadcast %23 : i32 to vector<32x128xi32>
    %25 = arith.remsi %1, %24 : vector<32x128xi32>
    %c0_i32_8 = arith.constant 0 : i32
    %26 = vector.broadcast %c0_i32_8 : i32 to vector<32x128xi32>
    %27 = arith.cmpi ne, %25, %26 : vector<32x128xi32>
    %c0_i32_9 = arith.constant 0 : i32
    %28 = vector.broadcast %c0_i32_9 : i32 to vector<32x128xi32>
    %29 = arith.cmpi slt, %25, %28 : vector<32x128xi32>
    %c0_i32_10 = arith.constant 0 : i32
    %30 = arith.cmpi slt, %23, %c0_i32_10 : i32
    %31 = vector.broadcast %30 : i1 to vector<32x128xi1>
    %32 = vector.broadcast %31 : vector<32x128xi1> to vector<32x128xi1>
    %33 = arith.xori %29, %32 : vector<32x128xi1>
    %34 = arith.andi %33, %27 : vector<32x128xi1>
    %35 = vector.broadcast %23 : i32 to vector<32x128xi32>
    %36 = arith.addi %25, %35 : vector<32x128xi32>
    %37 = arith.select %34, %36, %25 : vector<32x128xi1>, vector<32x128xi32>
    %c15_i32 = arith.constant 15 : i32
    %38 = vector.broadcast %c15_i32 : i32 to vector<32x128xi32>
    %39 = arith.cmpi ne, %37, %38 : vector<32x128xi32>
    %40 = arith.extui %39 : vector<32x128xi1> to vector<32x128xi32>
    %41 = arith.sitofp %40 : vector<32x128xi32> to vector<32x128xf32>
    %c0_11 = arith.constant 0 : index
    %c0_12 = arith.constant 0 : index
    %42 = vector.load %arg6[%c0_11, %c0_12] : memref<8x128xf32, #tpu.memory_space<vmem>>, vector<8x128xf32>
    %c0_13 = arith.constant 0 : index
    %c0_14 = arith.constant 0 : index
    %43 = vector.load %arg5[%c0_13, %c0_14] : memref<128x128xf32, #tpu.memory_space<vmem>>, vector<128x128xf32>
    %44 = vector.extract_strided_slice %0 {offsets = [31, 0], sizes = [1, 128], strides = [1, 1]} : vector<32x128xf32> to vector<1x128xf32>
    %45 = vector.extract_strided_slice %0 {offsets = [0, 0], sizes = [31, 128], strides = [1, 1]} : vector<32x128xf32> to vector<31x128xf32>
    %46 = tpu.concatenate %44, %45 in 0 : vector<1x128xf32>, vector<31x128xf32> -> vector<32x128xf32>
    %47 = arith.mulf %21, %46 : vector<32x128xf32>
    %48 = vector.extract_strided_slice %0 {offsets = [1, 0], sizes = [31, 128], strides = [1, 1]} : vector<32x128xf32> to vector<31x128xf32>
    %49 = vector.extract_strided_slice %0 {offsets = [0, 0], sizes = [1, 128], strides = [1, 1]} : vector<32x128xf32> to vector<1x128xf32>
    %50 = tpu.concatenate %48, %49 in 0 : vector<31x128xf32>, vector<1x128xf32> -> vector<32x128xf32>
    %51 = arith.mulf %41, %50 : vector<32x128xf32>
    %c0_15 = arith.constant 0 : index
    %c0_16 = arith.constant 0 : index
    %c0_17 = arith.constant 0 : index
    %52 = vector.load %arg2[%c0_15, %c0_16, %c0_17] : memref<3x128x128xf32, #tpu.memory_space<vmem>>, vector<1x128x128xf32>
    %53 = vector.shape_cast %52 : vector<1x128x128xf32> to vector<128x128xf32>
    %cst = arith.constant dense<0.000000e+00> : vector<32x128xf32>
    %54 = tpu.matmul %47, %53, %cst {dimension_numbers = #tpu.dot_dimension_numbers<[1], [0], [0], [1], [0, 0, 1, 1], [], []>} : vector<32x128xf32>, vector<128x128xf32>, vector<32x128xf32> -> vector<32x128xf32>
    %c1 = arith.constant 1 : index
    %c0_18 = arith.constant 0 : index
    %c0_19 = arith.constant 0 : index
    %55 = vector.load %arg2[%c1, %c0_18, %c0_19] : memref<3x128x128xf32, #tpu.memory_space<vmem>>, vector<1x128x128xf32>
    %56 = vector.shape_cast %55 : vector<1x128x128xf32> to vector<128x128xf32>
    %cst_20 = arith.constant dense<0.000000e+00> : vector<32x128xf32>
    %57 = tpu.matmul %0, %56, %cst_20 {dimension_numbers = #tpu.dot_dimension_numbers<[1], [0], [0], [1], [0, 0, 1, 1], [], []>} : vector<32x128xf32>, vector<128x128xf32>, vector<32x128xf32> -> vector<32x128xf32>
    %58 = arith.addf %54, %57 : vector<32x128xf32>
    %c2 = arith.constant 2 : index
    %c0_21 = arith.constant 0 : index
    %c0_22 = arith.constant 0 : index
    %59 = vector.load %arg2[%c2, %c0_21, %c0_22] : memref<3x128x128xf32, #tpu.memory_space<vmem>>, vector<1x128x128xf32>
    %60 = vector.shape_cast %59 : vector<1x128x128xf32> to vector<128x128xf32>
    %cst_23 = arith.constant dense<0.000000e+00> : vector<32x128xf32>
    %61 = tpu.matmul %51, %60, %cst_23 {dimension_numbers = #tpu.dot_dimension_numbers<[1], [0], [0], [1], [0, 0, 1, 1], [], []>} : vector<32x128xf32>, vector<128x128xf32>, vector<32x128xf32> -> vector<32x128xf32>
    %62 = arith.addf %58, %61 : vector<32x128xf32>
    %63 = vector.extract_strided_slice %42 {offsets = [0, 0], sizes = [1, 128], strides = [1, 1]} : vector<8x128xf32> to vector<1x128xf32>
    %64 = vector.extract_strided_slice %42 {offsets = [1, 0], sizes = [1, 128], strides = [1, 1]} : vector<8x128xf32> to vector<1x128xf32>
    %cst_24 = arith.constant dense<0.000000e+00> : vector<128xf32>
    %65 = vector.multi_reduction <add>, %62, %cst_24 [0] : vector<32x128xf32> to vector<128xf32>
    %66 = vector.shape_cast %65 : vector<128xf32> to vector<1x128xf32>
    %67 = arith.mulf %62, %62 : vector<32x128xf32>
    %cst_25 = arith.constant dense<0.000000e+00> : vector<128xf32>
    %68 = vector.multi_reduction <add>, %67, %cst_25 [0] : vector<32x128xf32> to vector<128xf32>
    %69 = vector.shape_cast %68 : vector<128xf32> to vector<1x128xf32>
    %70 = tpu.concatenate %66, %69 in 0 : vector<1x128xf32>, vector<1x128xf32> -> vector<2x128xf32>
    %cst_26 = arith.constant dense<0.000000e+00> : vector<2x128xf32>
    %71 = tpu.matmul %70, %43, %cst_26 {dimension_numbers = #tpu.dot_dimension_numbers<[1], [0], [0], [1], [0, 0, 1, 1], [], []>} : vector<2x128xf32>, vector<128x128xf32>, vector<2x128xf32> -> vector<2x128xf32>
    %72 = vector.extract_strided_slice %71 {offsets = [0, 0], sizes = [1, 128], strides = [1, 1]} : vector<2x128xf32> to vector<1x128xf32>
    %73 = vector.extract_strided_slice %71 {offsets = [1, 0], sizes = [1, 128], strides = [1, 1]} : vector<2x128xf32> to vector<1x128xf32>
    %74 = arith.mulf %72, %72 : vector<1x128xf32>
    %75 = arith.subf %73, %74 : vector<1x128xf32>
    %cst_27 = arith.constant 0.000000e+00 : f32
    %76 = vector.broadcast %cst_27 : f32 to vector<1x128xf32>
    %77 = arith.maximumf %75, %76 : vector<1x128xf32>
    %cst_28 = arith.constant 9.99999974E-6 : f32
    %78 = vector.broadcast %cst_28 : f32 to vector<1x128xf32>
    %79 = arith.addf %77, %78 : vector<1x128xf32>
    %80 = math.rsqrt %79 : vector<1x128xf32>
    %81 = arith.mulf %80, %63 : vector<1x128xf32>
    %82 = arith.mulf %72, %81 : vector<1x128xf32>
    %83 = arith.subf %64, %82 : vector<1x128xf32>
    %84 = vector.broadcast %81 : vector<1x128xf32> to vector<32x128xf32>
    %85 = arith.mulf %62, %84 : vector<32x128xf32>
    %86 = vector.broadcast %83 : vector<1x128xf32> to vector<32x128xf32>
    %87 = arith.addf %85, %86 : vector<32x128xf32>
    %cst_29 = arith.constant 0.000000e+00 : f32
    %88 = vector.broadcast %cst_29 : f32 to vector<32x128xf32>
    %89 = arith.maximumf %87, %88 : vector<32x128xf32>
    %90 = vector.extract_strided_slice %89 {offsets = [31, 0], sizes = [1, 128], strides = [1, 1]} : vector<32x128xf32> to vector<1x128xf32>
    %91 = vector.extract_strided_slice %89 {offsets = [0, 0], sizes = [31, 128], strides = [1, 1]} : vector<32x128xf32> to vector<31x128xf32>
    %92 = tpu.concatenate %90, %91 in 0 : vector<1x128xf32>, vector<31x128xf32> -> vector<32x128xf32>
    %93 = arith.mulf %21, %92 : vector<32x128xf32>
    %94 = vector.extract_strided_slice %89 {offsets = [1, 0], sizes = [31, 128], strides = [1, 1]} : vector<32x128xf32> to vector<31x128xf32>
    %95 = vector.extract_strided_slice %89 {offsets = [0, 0], sizes = [1, 128], strides = [1, 1]} : vector<32x128xf32> to vector<1x128xf32>
    %96 = tpu.concatenate %94, %95 in 0 : vector<31x128xf32>, vector<1x128xf32> -> vector<32x128xf32>
    %97 = arith.mulf %41, %96 : vector<32x128xf32>
    %c0_30 = arith.constant 0 : index
    %c0_31 = arith.constant 0 : index
    %c0_32 = arith.constant 0 : index
    %98 = vector.load %arg3[%c0_30, %c0_31, %c0_32] : memref<3x128x128xf32, #tpu.memory_space<vmem>>, vector<1x128x128xf32>
    %99 = vector.shape_cast %98 : vector<1x128x128xf32> to vector<128x128xf32>
    %cst_33 = arith.constant dense<0.000000e+00> : vector<32x128xf32>
    %100 = tpu.matmul %93, %99, %cst_33 {dimension_numbers = #tpu.dot_dimension_numbers<[1], [0], [0], [1], [0, 0, 1, 1], [], []>} : vector<32x128xf32>, vector<128x128xf32>, vector<32x128xf32> -> vector<32x128xf32>
    %c1_34 = arith.constant 1 : index
    %c0_35 = arith.constant 0 : index
    %c0_36 = arith.constant 0 : index
    %101 = vector.load %arg3[%c1_34, %c0_35, %c0_36] : memref<3x128x128xf32, #tpu.memory_space<vmem>>, vector<1x128x128xf32>
    %102 = vector.shape_cast %101 : vector<1x128x128xf32> to vector<128x128xf32>
    %cst_37 = arith.constant dense<0.000000e+00> : vector<32x128xf32>
    %103 = tpu.matmul %89, %102, %cst_37 {dimension_numbers = #tpu.dot_dimension_numbers<[1], [0], [0], [1], [0, 0, 1, 1], [], []>} : vector<32x128xf32>, vector<128x128xf32>, vector<32x128xf32> -> vector<32x128xf32>
    %104 = arith.addf %100, %103 : vector<32x128xf32>
    %c2_38 = arith.constant 2 : index
    %c0_39 = arith.constant 0 : index
    %c0_40 = arith.constant 0 : index
    %105 = vector.load %arg3[%c2_38, %c0_39, %c0_40] : memref<3x128x128xf32, #tpu.memory_space<vmem>>, vector<1x128x128xf32>
    %106 = vector.shape_cast %105 : vector<1x128x128xf32> to vector<128x128xf32>
    %cst_41 = arith.constant dense<0.000000e+00> : vector<32x128xf32>
    %107 = tpu.matmul %97, %106, %cst_41 {dimension_numbers = #tpu.dot_dimension_numbers<[1], [0], [0], [1], [0, 0, 1, 1], [], []>} : vector<32x128xf32>, vector<128x128xf32>, vector<32x128xf32> -> vector<32x128xf32>
    %108 = arith.addf %104, %107 : vector<32x128xf32>
    %109 = vector.extract_strided_slice %42 {offsets = [2, 0], sizes = [1, 128], strides = [1, 1]} : vector<8x128xf32> to vector<1x128xf32>
    %110 = vector.extract_strided_slice %42 {offsets = [3, 0], sizes = [1, 128], strides = [1, 1]} : vector<8x128xf32> to vector<1x128xf32>
    %cst_42 = arith.constant dense<0.000000e+00> : vector<128xf32>
    %111 = vector.multi_reduction <add>, %108, %cst_42 [0] : vector<32x128xf32> to vector<128xf32>
    %112 = vector.shape_cast %111 : vector<128xf32> to vector<1x128xf32>
    %113 = arith.mulf %108, %108 : vector<32x128xf32>
    %cst_43 = arith.constant dense<0.000000e+00> : vector<128xf32>
    %114 = vector.multi_reduction <add>, %113, %cst_43 [0] : vector<32x128xf32> to vector<128xf32>
    %115 = vector.shape_cast %114 : vector<128xf32> to vector<1x128xf32>
    %116 = tpu.concatenate %112, %115 in 0 : vector<1x128xf32>, vector<1x128xf32> -> vector<2x128xf32>
    %cst_44 = arith.constant dense<0.000000e+00> : vector<2x128xf32>
    %117 = tpu.matmul %116, %43, %cst_44 {dimension_numbers = #tpu.dot_dimension_numbers<[1], [0], [0], [1], [0, 0, 1, 1], [], []>} : vector<2x128xf32>, vector<128x128xf32>, vector<2x128xf32> -> vector<2x128xf32>
    %118 = vector.extract_strided_slice %117 {offsets = [0, 0], sizes = [1, 128], strides = [1, 1]} : vector<2x128xf32> to vector<1x128xf32>
    %119 = vector.extract_strided_slice %117 {offsets = [1, 0], sizes = [1, 128], strides = [1, 1]} : vector<2x128xf32> to vector<1x128xf32>
    %120 = arith.mulf %118, %118 : vector<1x128xf32>
    %121 = arith.subf %119, %120 : vector<1x128xf32>
    %cst_45 = arith.constant 0.000000e+00 : f32
    %122 = vector.broadcast %cst_45 : f32 to vector<1x128xf32>
    %123 = arith.maximumf %121, %122 : vector<1x128xf32>
    %cst_46 = arith.constant 9.99999974E-6 : f32
    %124 = vector.broadcast %cst_46 : f32 to vector<1x128xf32>
    %125 = arith.addf %123, %124 : vector<1x128xf32>
    %126 = math.rsqrt %125 : vector<1x128xf32>
    %127 = arith.mulf %126, %109 : vector<1x128xf32>
    %128 = arith.mulf %118, %127 : vector<1x128xf32>
    %129 = arith.subf %110, %128 : vector<1x128xf32>
    %130 = vector.broadcast %127 : vector<1x128xf32> to vector<32x128xf32>
    %131 = arith.mulf %108, %130 : vector<32x128xf32>
    %132 = vector.broadcast %129 : vector<1x128xf32> to vector<32x128xf32>
    %133 = arith.addf %131, %132 : vector<32x128xf32>
    %cst_47 = arith.constant 0.000000e+00 : f32
    %134 = vector.broadcast %cst_47 : f32 to vector<32x128xf32>
    %135 = arith.maximumf %133, %134 : vector<32x128xf32>
    %136 = vector.extract_strided_slice %135 {offsets = [31, 0], sizes = [1, 128], strides = [1, 1]} : vector<32x128xf32> to vector<1x128xf32>
    %137 = vector.extract_strided_slice %135 {offsets = [0, 0], sizes = [31, 128], strides = [1, 1]} : vector<32x128xf32> to vector<31x128xf32>
    %138 = tpu.concatenate %136, %137 in 0 : vector<1x128xf32>, vector<31x128xf32> -> vector<32x128xf32>
    %139 = arith.mulf %21, %138 : vector<32x128xf32>
    %140 = vector.extract_strided_slice %135 {offsets = [1, 0], sizes = [31, 128], strides = [1, 1]} : vector<32x128xf32> to vector<31x128xf32>
    %141 = vector.extract_strided_slice %135 {offsets = [0, 0], sizes = [1, 128], strides = [1, 1]} : vector<32x128xf32> to vector<1x128xf32>
    %142 = tpu.concatenate %140, %141 in 0 : vector<31x128xf32>, vector<1x128xf32> -> vector<32x128xf32>
    %143 = arith.mulf %41, %142 : vector<32x128xf32>
    %c0_48 = arith.constant 0 : index
    %c0_49 = arith.constant 0 : index
    %c0_50 = arith.constant 0 : index
    %144 = vector.load %arg4[%c0_48, %c0_49, %c0_50] : memref<3x128x128xf32, #tpu.memory_space<vmem>>, vector<1x128x128xf32>
    %145 = vector.shape_cast %144 : vector<1x128x128xf32> to vector<128x128xf32>
    %cst_51 = arith.constant dense<0.000000e+00> : vector<32x128xf32>
    %146 = tpu.matmul %139, %145, %cst_51 {dimension_numbers = #tpu.dot_dimension_numbers<[1], [0], [0], [1], [0, 0, 1, 1], [], []>} : vector<32x128xf32>, vector<128x128xf32>, vector<32x128xf32> -> vector<32x128xf32>
    %c1_52 = arith.constant 1 : index
    %c0_53 = arith.constant 0 : index
    %c0_54 = arith.constant 0 : index
    %147 = vector.load %arg4[%c1_52, %c0_53, %c0_54] : memref<3x128x128xf32, #tpu.memory_space<vmem>>, vector<1x128x128xf32>
    %148 = vector.shape_cast %147 : vector<1x128x128xf32> to vector<128x128xf32>
    %cst_55 = arith.constant dense<0.000000e+00> : vector<32x128xf32>
    %149 = tpu.matmul %135, %148, %cst_55 {dimension_numbers = #tpu.dot_dimension_numbers<[1], [0], [0], [1], [0, 0, 1, 1], [], []>} : vector<32x128xf32>, vector<128x128xf32>, vector<32x128xf32> -> vector<32x128xf32>
    %150 = arith.addf %146, %149 : vector<32x128xf32>
    %c2_56 = arith.constant 2 : index
    %c0_57 = arith.constant 0 : index
    %c0_58 = arith.constant 0 : index
    %151 = vector.load %arg4[%c2_56, %c0_57, %c0_58] : memref<3x128x128xf32, #tpu.memory_space<vmem>>, vector<1x128x128xf32>
    %152 = vector.shape_cast %151 : vector<1x128x128xf32> to vector<128x128xf32>
    %cst_59 = arith.constant dense<0.000000e+00> : vector<32x128xf32>
    %153 = tpu.matmul %143, %152, %cst_59 {dimension_numbers = #tpu.dot_dimension_numbers<[1], [0], [0], [1], [0, 0, 1, 1], [], []>} : vector<32x128xf32>, vector<128x128xf32>, vector<32x128xf32> -> vector<32x128xf32>
    %154 = arith.addf %150, %153 : vector<32x128xf32>
    %155 = vector.extract_strided_slice %42 {offsets = [4, 0], sizes = [1, 128], strides = [1, 1]} : vector<8x128xf32> to vector<1x128xf32>
    %156 = vector.extract_strided_slice %42 {offsets = [5, 0], sizes = [1, 128], strides = [1, 1]} : vector<8x128xf32> to vector<1x128xf32>
    %cst_60 = arith.constant dense<0.000000e+00> : vector<128xf32>
    %157 = vector.multi_reduction <add>, %154, %cst_60 [0] : vector<32x128xf32> to vector<128xf32>
    %158 = vector.shape_cast %157 : vector<128xf32> to vector<1x128xf32>
    %159 = arith.mulf %154, %154 : vector<32x128xf32>
    %cst_61 = arith.constant dense<0.000000e+00> : vector<128xf32>
    %160 = vector.multi_reduction <add>, %159, %cst_61 [0] : vector<32x128xf32> to vector<128xf32>
    %161 = vector.shape_cast %160 : vector<128xf32> to vector<1x128xf32>
    %162 = tpu.concatenate %158, %161 in 0 : vector<1x128xf32>, vector<1x128xf32> -> vector<2x128xf32>
    %cst_62 = arith.constant dense<0.000000e+00> : vector<2x128xf32>
    %163 = tpu.matmul %162, %43, %cst_62 {dimension_numbers = #tpu.dot_dimension_numbers<[1], [0], [0], [1], [0, 0, 1, 1], [], []>} : vector<2x128xf32>, vector<128x128xf32>, vector<2x128xf32> -> vector<2x128xf32>
    %164 = vector.extract_strided_slice %163 {offsets = [0, 0], sizes = [1, 128], strides = [1, 1]} : vector<2x128xf32> to vector<1x128xf32>
    %165 = vector.extract_strided_slice %163 {offsets = [1, 0], sizes = [1, 128], strides = [1, 1]} : vector<2x128xf32> to vector<1x128xf32>
    %166 = arith.mulf %164, %164 : vector<1x128xf32>
    %167 = arith.subf %165, %166 : vector<1x128xf32>
    %cst_63 = arith.constant 0.000000e+00 : f32
    %168 = vector.broadcast %cst_63 : f32 to vector<1x128xf32>
    %169 = arith.maximumf %167, %168 : vector<1x128xf32>
    %cst_64 = arith.constant 9.99999974E-6 : f32
    %170 = vector.broadcast %cst_64 : f32 to vector<1x128xf32>
    %171 = arith.addf %169, %170 : vector<1x128xf32>
    %172 = math.rsqrt %171 : vector<1x128xf32>
    %173 = arith.mulf %172, %155 : vector<1x128xf32>
    %174 = arith.mulf %164, %173 : vector<1x128xf32>
    %175 = arith.subf %156, %174 : vector<1x128xf32>
    %176 = vector.broadcast %173 : vector<1x128xf32> to vector<32x128xf32>
    %177 = arith.mulf %154, %176 : vector<32x128xf32>
    %178 = vector.broadcast %175 : vector<1x128xf32> to vector<32x128xf32>
    %179 = arith.addf %177, %178 : vector<32x128xf32>
    %180 = arith.addf %179, %0 : vector<32x128xf32>
    %cst_65 = arith.constant 0.000000e+00 : f32
    %181 = vector.broadcast %cst_65 : f32 to vector<32x128xf32>
    %182 = arith.maximumf %180, %181 : vector<32x128xf32>
    %c0_66 = arith.constant 0 : index
    %c0_67 = arith.constant 0 : index
    %183 = vector.load %arg7[%c0_66, %c0_67] : memref<32x128xf32, #tpu.memory_space<vmem>>, vector<32x128xf32>
    tpu.vector_store %arg7[%c0_66, %c0_67], %182 {strides = array<i32>} : memref<32x128xf32, #tpu.memory_space<vmem>>, vector<32x128xf32>,
    return
  }
  func.func @transform_0(%arg0: i32) -> (i32, i32) {
    %c0_i32 = arith.constant 0 : i32
    %c0_i32_0 = arith.constant 0 : i32
    %c0_i32_1 = arith.constant 0 : i32
    return %c0_i32, %c0_i32_0 : i32, i32
  }
  func.func @transform_1(%arg0: i32) -> (i32, i32, i32) {
    %c0_i32 = arith.constant 0 : i32
    %c0_i32_0 = arith.constant 0 : i32
    %c0_i32_1 = arith.constant 0 : i32
    %c0_i32_2 = arith.constant 0 : i32
    return %c0_i32, %c0_i32_0, %c0_i32_1 : i32, i32, i32
  }
  func.func @transform_2(%arg0: i32) -> (i32, i32, i32) {
    %c0_i32 = arith.constant 0 : i32
    %c0_i32_0 = arith.constant 0 : i32
    %c0_i32_1 = arith.constant 0 : i32
    %c0_i32_2 = arith.constant 0 : i32
    return %c0_i32, %c0_i32_0, %c0_i32_1 : i32, i32, i32
  }
  func.func @transform_3(%arg0: i32) -> (i32, i32, i32) {
    %c0_i32 = arith.constant 0 : i32
    %c0_i32_0 = arith.constant 0 : i32
    %c0_i32_1 = arith.constant 0 : i32
    %c0_i32_2 = arith.constant 0 : i32
    return %c0_i32, %c0_i32_0, %c0_i32_1 : i32, i32, i32
  }
  func.func @transform_4(%arg0: i32) -> (i32, i32) {
    %c0_i32 = arith.constant 0 : i32
    %c0_i32_0 = arith.constant 0 : i32
    %c0_i32_1 = arith.constant 0 : i32
    return %c0_i32, %c0_i32_0 : i32, i32
  }
  func.func @transform_5(%arg0: i32) -> (i32, i32) {
    %c0_i32 = arith.constant 0 : i32
    %c0_i32_0 = arith.constant 0 : i32
    %c0_i32_1 = arith.constant 0 : i32
    return %c0_i32, %c0_i32_0 : i32, i32
  }
  func.func @transform_6(%arg0: i32) -> (i32, i32) {
    %c0_i32 = arith.constant 0 : i32
    %c0_i32_0 = arith.constant 0 : i32
    %c0_i32_1 = arith.constant 0 : i32
    return %c0_i32, %c0_i32_0 : i32, i32
  }
}

</mosaic_0001>

<llo_original>
// kernel: tpu_custom_call.1
$region0: #{tpu_custom_call.1}
  #allocation0 [shape = 'u32[]', space=smem, size = 0x4, offset = 0x4, fixed_abs, tag = 'smem constant byte address 0x4 - core index']
  #allocation1 [shape = 'u32[144,128]{1,0:T(1,128)}', space=vmem, size = 0x12000, scoped, tag = 'internal scratch']
  %s0 = inlined_call_operand.hbm [shape: f32[32,128], index: 0, kind: input, shape index: {}]
  %s1 = inlined_call_operand.hbm [shape: f32[3,128,128], index: 1, kind: input, shape index: {}]
  %s2 = inlined_call_operand.hbm [shape: f32[3,128,128], index: 2, kind: input, shape index: {}]
  %s3 = inlined_call_operand.hbm [shape: f32[3,128,128], index: 3, kind: input, shape index: {}]
  %s4 = inlined_call_operand.hbm [shape: f32[128,128], index: 4, kind: input, shape index: {}]
  %s5 = inlined_call_operand.vmem [shape: f32[8,128], index: 5, kind: input, shape index: {}]
  %s6 = inlined_call_operand.hbm [shape: f32[32,128], index: 6, kind: output, shape index: {}]
  %s7 = sld [smem:[#allocation0]]
  $region54: #{tpu_custom_call.1} parent=0
    _
  %s9 = ssub.s32 1, %s7
  %s10 = scalar_select 0, %s9, %s7
  $region1: #{tpu_custom_call.1} parent=0
    #allocation2 [shape = 'u8[16384]{0}', space=vmem, size = 0x4000, scoped, tag = 'input window, operand 0, single buffered']
    #allocation3 [shape = 's32[1]{0}', space=sflag, size = 0x4, scoped, tag = 'scoped memory for tpu_custom_call.1']
    #allocation4 [shape = 's32[1]{0}', space=sflag, size = 0x4, scoped, tag = 'scoped memory for tpu_custom_call.1']
    #allocation5 [shape = 'u8[196608]{0}', space=vmem, size = 0x30000, scoped, tag = 'input window, operand 1, single buffered']
    #allocation6 [shape = 's32[1]{0}', space=sflag, size = 0x4, scoped, tag = 'scoped memory for tpu_custom_call.1']
    #allocation7 [shape = 'u8[196608]{0}', space=vmem, size = 0x30000, scoped, tag = 'input window, operand 2, single buffered']
    #allocation8 [shape = 'u8[196608]{0}', space=vmem, size = 0x30000, scoped, tag = 'input window, operand 3, single buffered']
    #allocation9 [shape = 's32[1]{0}', space=sflag, size = 0x4, scoped, tag = 'scoped memory for tpu_custom_call.1']
    #allocation10 [shape = 'u8[65536]{0}', space=vmem, size = 0x10000, scoped, tag = 'input window, operand 4, single buffered']
    #allocation11 [shape = 'u8[16384]{0}', space=vmem, size = 0x4000, scoped, tag = 'output window, operand 0, single buffered']
    %11 = vsyncpa [#allocation3], 0
    %12 = vsyncpa [#allocation6], 0
    %13 = vsyncpa [#allocation9], 0
    %14 = vsyncpa [#allocation4], 0
    // Predicated region
    $region2: #{tpu_custom_call.1} parent=1 // pred_check
      _
    $region3: #{tpu_custom_call.1} parent=1 // pred_check_branch
      %16 = sbr.rel (0) target = $region5
    $region4: #{tpu_custom_call.1} parent=1 // pred_region
      %s18 = ssub.s32 512, 512
      %19 = vsyncadd [#allocation3], %s18
      %s20 = sshll.u32 [#allocation2], 4
      %s21 = int_to_ptr.vmem [resolvable:$true] %s20
      %26 = dma.hbm_to_vmem [thread:$0]  %s0, 512, %s21, [#allocation3], 128, 128, 8
    $region5: #{tpu_custom_call.1} parent=1 // pred_fallthru
      _
    // Predicated region
    $region6: #{tpu_custom_call.1} parent=1 // pred_check
      _
    $region7: #{tpu_custom_call.1} parent=1 // pred_check_branch
      %28 = sbr.rel (0) target = $region9
    $region8: #{tpu_custom_call.1} parent=1 // pred_region
      %s30 = ssub.s32 6144, 6144
      %31 = vsyncadd [#allocation6], %s30
      %s32 = sshll.u32 [#allocation5], 4
      %s33 = int_to_ptr.vmem [resolvable:$true] %s32
      %38 = dma.hbm_to_vmem [thread:$0]  %s1, 6144, %s33, [#allocation6], 128, 128, 8
    $region9: #{tpu_custom_call.1} parent=1 // pred_fallthru
      _
    // Predicated region
    $region10: #{tpu_custom_call.1} parent=1 // pred_check
      _
    $region11: #{tpu_custom_call.1} parent=1 // pred_check_branch
      %40 = sbr.rel (0) target = $region13
    $region12: #{tpu_custom_call.1} parent=1 // pred_region
      %s42 = ssub.s32 6144, 6144
      %43 = vsyncadd [#allocation6], %s42
      %s44 = sshll.u32 [#allocation7], 4
      %s45 = int_to_ptr.vmem [resolvable:$true] %s44
      %50 = dma.hbm_to_vmem [thread:$0]  %s2, 6144, %s45, [#allocation6], 128, 128, 8
    $region13: #{tpu_custom_call.1} parent=1 // pred_fallthru
      _
    // Predicated region
    $region14: #{tpu_custom_call.1} parent=1 // pred_check
      _
    $region15: #{tpu_custom_call.1} parent=1 // pred_check_branch
      %52 = sbr.rel (0) target = $region17
    $region16: #{tpu_custom_call.1} parent=1 // pred_region
      %s54 = ssub.s32 6144, 6144
      %55 = vsyncadd [#allocation9], %s54
      %s56 = sshll.u32 [#allocation8], 4
      %s57 = int_to_ptr.vmem [resolvable:$true] %s56
      %62 = dma.hbm_to_vmem [thread:$0]  %s3, 6144, %s57, [#allocation9], 128, 128, 8
    $region17: #{tpu_custom_call.1} parent=1 // pred_fallthru
      _
    // Predicated region
    $region18: #{tpu_custom_call.1} parent=1 // pred_check
      _
    $region19: #{tpu_custom_call.1} parent=1 // pred_check_branch
      %64 = sbr.rel (0) target = $region21
    $region20: #{tpu_custom_call.1} parent=1 // pred_region
      %s66 = ssub.s32 2048, 2048
      %67 = vsyncadd [#allocation9], %s66
      %s68 = sshll.u32 [#allocation10], 4
      %s69 = int_to_ptr.vmem [resolvable:$true] %s68
      %74 = dma.hbm_to_vmem [thread:$0]  %s4, 2048, %s69, [#allocation9], 128, 128, 8
    $region21: #{tpu_custom_call.1} parent=1 // pred_fallthru
      _
    // Predicated region
    $region22: #{tpu_custom_call.1} parent=1 // pred_check
      _
    $region23: #{tpu_custom_call.1} parent=1 // pred_check_branch
      %76 = sbr.rel (0) target = $region25
    $region24: #{tpu_custom_call.1} parent=1 // pred_region
      _
    $region25: #{tpu_custom_call.1} parent=1 // pred_fallthru
      _
    // Predicated region
    $region26: #{tpu_custom_call.1} parent=1 // pred_check
      _
    $region27: #{tpu_custom_call.1} parent=1 // pred_check_branch
      %78 = sbr.rel (0) target = $region29
    $region28: #{tpu_custom_call.1} parent=1 // pred_region
      %79 = dma.done [#allocation3], 512
    $region29: #{tpu_custom_call.1} parent=1 // pred_fallthru
      _
    // Predicated region
    $region30: #{tpu_custom_call.1} parent=1 // pred_check
      _
    $region31: #{tpu_custom_call.1} parent=1 // pred_check_branch
      %81 = sbr.rel (0) target = $region33
    $region32: #{tpu_custom_call.1} parent=1 // pred_region
      %82 = dma.done [#allocation6], 6144
    $region33: #{tpu_custom_call.1} parent=1 // pred_fallthru
      _
    // Predicated region
    $region34: #{tpu_custom_call.1} parent=1 // pred_check
      _
    $region35: #{tpu_custom_call.1} parent=1 // pred_check_branch
      %84 = sbr.rel (0) target = $region37
    $region36: #{tpu_custom_call.1} parent=1 // pred_region
      %85 = dma.done [#allocation6], 6144
    $region37: #{tpu_custom_call.1} parent=1 // pred_fallthru
      _
    // Predicated region
    $region38: #{tpu_custom_call.1} parent=1 // pred_check
      _
    $region39: #{tpu_custom_call.1} parent=1 // pred_check_branch
      %87 = sbr.rel (0) target = $region41
    $region40: #{tpu_custom_call.1} parent=1 // pred_region
      %88 = dma.done [#allocation9], 6144
    $region41: #{tpu_custom_call.1} parent=1 // pred_fallthru
      _
    // Predicated region
    $region42: #{tpu_custom_call.1} parent=1 // pred_check
      _
    $region43: #{tpu_custom_call.1} parent=1 // pred_check_branch
      %90 = sbr.rel (0) target = $region45
    $region44: #{tpu_custom_call.1} parent=1 // pred_region
      %91 = dma.done [#allocation9], 2048
    $region45: #{tpu_custom_call.1} parent=1 // pred_fallthru
      _
    %v92 = vld [vmem:[#allocation2] sm:$0xff]
    %v93 = vld [vmem:[#allocation2 + $0x8] sm:$0xff]
    %v94 = vld [vmem:[#allocation2 + $0x10] sm:$0xff]
    %v95 = vld [vmem:[#allocation2 + $0x18] sm:$0xff]
    %v96 = vlaneseq
    %v97 = vshrl.u32 %v96, 7
    %v98 = vadd.s32 %v97, 8
    %v99 = vadd.s32 %v97, 16
    %v100 = vadd.s32 %v97, 24
    %vm101 = vcmp.lt.s32.totalorder %v97, 0
    %v102 = vsub.s32 0, %v97
    %v103 = vsel %vm101, %v102, %v97
    %v104 = vshrl.u32 %v103, 4
    %v105 = vand.u32 %v103, 15
    %v106 = vsub.s32 0, %v105
    %v107 = vsel %vm101, %v106, %v105
    %vm108 = vcmp.lt.s32.totalorder %v98, 0
    %v109 = vsub.s32 0, %v98
    %v110 = vsel %vm108, %v109, %v98
    %v111 = vshrl.u32 %v110, 4
    %v112 = vand.u32 %v110, 15
    %v113 = vsub.s32 0, %v112
    %v114 = vsel %vm108, %v113, %v112
    %vm115 = vcmp.lt.s32.totalorder %v99, 0
    %v116 = vsub.s32 0, %v99
    %v117 = vsel %vm115, %v116, %v99
    %v118 = vshrl.u32 %v117, 4
    %v119 = vand.u32 %v117, 15
    %v120 = vsub.s32 0, %v119
    %v121 = vsel %vm115, %v120, %v119
    %vm122 = vcmp.lt.s32.totalorder %v100, 0
    %v123 = vsub.s32 0, %v100
    %v124 = vsel %vm122, %v123, %v100
    %v125 = vshrl.u32 %v124, 4
    %v126 = vand.u32 %v124, 15
    %v127 = vsub.s32 0, %v126
    %v128 = vsel %vm122, %v127, %v126
    %vm129 = vcmp.ne.s32.totalorder %v107, 0
    %vm130 = vcmp.ne.s32.totalorder %v114, 0
    %vm131 = vcmp.ne.s32.totalorder %v121, 0
    %vm132 = vcmp.ne.s32.totalorder %v128, 0
    %vm133 = vcmp.lt.s32.totalorder %v107, 0
    %vm134 = vcmp.lt.s32.totalorder %v114, 0
    %vm135 = vcmp.lt.s32.totalorder %v121, 0
    %vm136 = vcmp.lt.s32.totalorder %v128, 0
    %vm137 = vmand %vm133, %vm129
    %vm138 = vmand %vm134, %vm130
    %vm139 = vmand %vm135, %vm131
    %vm140 = vmand %vm136, %vm132
    %v141 = vadd.s32 %v107, 16
    %v142 = vadd.s32 %v114, 16
    %v143 = vadd.s32 %v121, 16
    %v144 = vadd.s32 %v128, 16
    %v145 = vsel %vm137, %v141, %v107
    %v146 = vsel %vm138, %v142, %v114
    %v147 = vsel %vm139, %v143, %v121
    %v148 = vsel %vm140, %v144, %v128
    %vm149 = vcmp.ne.s32.totalorder %v145, 0
    %vm150 = vcmp.ne.s32.totalorder %v146, 0
    %vm151 = vcmp.ne.s32.totalorder %v147, 0
    %vm152 = vcmp.ne.s32.totalorder %v148, 0
    %v153 = vsel %vm149, 1, 0
    %v154 = vsel %vm150, 1, 0
    %v155 = vsel %vm151, 1, 0
    %v156 = vsel %vm152, 1, 0
    %v157 = vcvt.s32.f32 %v153
    %v158 = vcvt.s32.f32 %v154
    %v159 = vcvt.s32.f32 %v155
    %v160 = vcvt.s32.f32 %v156
    %vm161 = vcmp.ne.s32.totalorder %v145, 15
    %vm162 = vcmp.ne.s32.totalorder %v146, 15
    %vm163 = vcmp.ne.s32.totalorder %v147, 15
    %vm164 = vcmp.ne.s32.totalorder %v148, 15
    %v165 = vsel %vm161, 1, 0
    %v166 = vsel %vm162, 1, 0
    %v167 = vsel %vm163, 1, 0
    %v168 = vsel %vm164, 1, 0
    %v169 = vcvt.s32.f32 %v165
    %v170 = vcvt.s32.f32 %v166
    %v171 = vcvt.s32.f32 %v167
    %v172 = vcvt.s32.f32 %v168
    %v173 = vld [vmem:[%s5] sm:$0xff]
    %v174 = vld [vmem:[#allocation10] sm:$0xff]
    %v175 = vld [vmem:[#allocation10 + $0x8] sm:$0xff]
    %v176 = vld [vmem:[#allocation10 + $0x10] sm:$0xff]
    %v177 = vld [vmem:[#allocation10 + $0x18] sm:$0xff]
    %v178 = vld [vmem:[#allocation10 + $0x20] sm:$0xff]
    %v179 = vld [vmem:[#allocation10 + $0x28] sm:$0xff]
    %v180 = vld [vmem:[#allocation10 + $0x30] sm:$0xff]
    %v181 = vld [vmem:[#allocation10 + $0x38] sm:$0xff]
    %v182 = vld [vmem:[#allocation10 + $0x40] sm:$0xff]
    %v183 = vld [vmem:[#allocation10 + $0x48] sm:$0xff]
    %v184 = vld [vmem:[#allocation10 + $0x50] sm:$0xff]
    %v185 = vld [vmem:[#allocation10 + $0x58] sm:$0xff]
    %v186 = vld [vmem:[#allocation10 + $0x60] sm:$0xff]
    %v187 = vld [vmem:[#allocation10 + $0x68] sm:$0xff]
    %v188 = vld [vmem:[#allocation10 + $0x70] sm:$0xff]
    %v189 = vld [vmem:[#allocation10 + $0x78] sm:$0xff]
    %v191 = vrot.slane %v95, 7
    %vm196 = vcmask 1040384
    %v197 = vrot.slane %v92, 7
    %v198 = vrot.slane %v93, 7
    %v199 = vsel %vm196, %v197, %v198
    %v200 = vrot.slane %v94, 7
    %v201 = vsel %vm196, %v198, %v200
    %v202 = vsel %vm196, %v200, %v191
    %v207 = vsel %vm196, %v191, %v197
    %v208 = vmul.f32 %v157, %v207
    %v209 = vmul.f32 %v158, %v199
    %v210 = vmul.f32 %v159, %v201
    %v211 = vmul.f32 %v160, %v202
    %vm212 = vcmask 1046528
    %v213 = vrot.slane %v92, 1
    %v214 = vrot.slane %v93, 1
    %v215 = vsel %vm212, %v213, %v214
    %v216 = vrot.slane %v94, 1
    %v217 = vsel %vm212, %v214, %v216
    %v218 = vrot.slane %v95, 1
    %v219 = vsel %vm212, %v216, %v218
    %v225 = vsel %vm212, %v218, %v213
    %v226 = vmul.f32 %v169, %v215
    %v227 = vmul.f32 %v170, %v217
    %v228 = vmul.f32 %v171, %v219
    %v229 = vmul.f32 %v172, %v225
    %v230 = vld [vmem:[#allocation5] sm:$0xff]
    %v231 = vld [vmem:[#allocation5 + $0x8] sm:$0xff]
    %v232 = vld [vmem:[#allocation5 + $0x10] sm:$0xff]
    %v233 = vld [vmem:[#allocation5 + $0x18] sm:$0xff]
    %v234 = vld [vmem:[#allocation5 + $0x20] sm:$0xff]
    %v235 = vld [vmem:[#allocation5 + $0x28] sm:$0xff]
    %v236 = vld [vmem:[#allocation5 + $0x30] sm:$0xff]
    %v237 = vld [vmem:[#allocation5 + $0x38] sm:$0xff]
    %v238 = vld [vmem:[#allocation5 + $0x40] sm:$0xff]
    %v239 = vld [vmem:[#allocation5 + $0x48] sm:$0xff]
    %v240 = vld [vmem:[#allocation5 + $0x50] sm:$0xff]
    %v241 = vld [vmem:[#allocation5 + $0x58] sm:$0xff]
    %v242 = vld [vmem:[#allocation5 + $0x60] sm:$0xff]
    %v243 = vld [vmem:[#allocation5 + $0x68] sm:$0xff]
    %v244 = vld [vmem:[#allocation5 + $0x70] sm:$0xff]
    %v245 = vld [vmem:[#allocation5 + $0x78] sm:$0xff]
    %s246 = scalar_lea.vmem [#allocation5], 128
    %v247 = vld [vmem:[%s246] sm:$0xff]
    %v248 = vld [vmem:[%s246 + $0x8] sm:$0xff]
    %v249 = vld [vmem:[%s246 + $0x10] sm:$0xff]
    %v250 = vld [vmem:[%s246 + $0x18] sm:$0xff]
    %v251 = vld [vmem:[%s246 + $0x20] sm:$0xff]
    %v252 = vld [vmem:[%s246 + $0x28] sm:$0xff]
    %v253 = vld [vmem:[%s246 + $0x30] sm:$0xff]
    %v254 = vld [vmem:[%s246 + $0x38] sm:$0xff]
    %v255 = vld [vmem:[%s246 + $0x40] sm:$0xff]
    %v256 = vld [vmem:[%s246 + $0x48] sm:$0xff]
    %v257 = vld [vmem:[%s246 + $0x50] sm:$0xff]
    %v258 = vld [vmem:[%s246 + $0x58] sm:$0xff]
    %v259 = vld [vmem:[%s246 + $0x60] sm:$0xff]
    %v260 = vld [vmem:[%s246 + $0x68] sm:$0xff]
    %v261 = vld [vmem:[%s246 + $0x70] sm:$0xff]
    %v262 = vld [vmem:[%s246 + $0x78] sm:$0xff]
    %263 = vmatprep.subr.mxu0 0.0
    %264 = vmatpush1.msra.mxu0 %v262
    %265 = vmatprep.subr.mxu0 0.0
    %266 = vmatpush1.msra.mxu0 %v261
    %267 = vmatprep.subr.mxu0 0.0
    %268 = vmatpush1.msra.mxu0 %v260
    %269 = vmatprep.subr.mxu0 0.0
    %270 = vmatpush1.msra.mxu0 %v259
    %271 = vmatprep.subr.mxu0 0.0
    %272 = vmatpush1.msra.mxu0 %v258
    %273 = vmatprep.subr.mxu0 0.0
    %274 = vmatpush1.msra.mxu0 %v257
    %275 = vmatprep.subr.mxu0 0.0
    %276 = vmatpush1.msra.mxu0 %v256
    %277 = vmatprep.subr.mxu0 0.0
    %278 = vmatpush1.msra.mxu0 %v255
    %279 = vmatprep.subr.mxu0 0.0
    %280 = vmatpush1.msra.mxu0 %v254
    %281 = vmatprep.subr.mxu0 0.0
    %282 = vmatpush1.msra.mxu0 %v253
    %283 = vmatprep.subr.mxu0 0.0
    %284 = vmatpush1.msra.mxu0 %v252
    %285 = vmatprep.subr.mxu0 0.0
    %286 = vmatpush1.msra.mxu0 %v251
    %287 = vmatprep.subr.mxu0 0.0
    %288 = vmatpush1.msra.mxu0 %v250
    %289 = vmatprep.subr.mxu0 0.0
    %290 = vmatpush1.msra.mxu0 %v249
    %291 = vmatprep.subr.mxu0 0.0
    %292 = vmatpush1.msra.mxu0 %v248
    %293 = vmatprep.subr.mxu0 0.0
    %294 = vmatpush1.msra.mxu0 %v247
    %295 = vmatprep.subr.mxu0 0.0
    %296 = vmatpush2.msra.mxu0 0.0
    %297 = vmatprep.subr.mxu0 0.0
    %298 = vmatpush2.msra.mxu0 0.0
    %299 = vmatprep.subr.mxu0 0.0
    %300 = vmatpush2.msra.mxu0 0.0
    %301 = vmatprep.subr.mxu0 0.0
    %302 = vmatpush2.msra.mxu0 0.0
    %303 = vmatprep.subr.mxu0 0.0
    %304 = vmatpush2.msra.mxu0 0.0
    %305 = vmatprep.subr.mxu0 0.0
    %306 = vmatpush2.msra.mxu0 0.0
    %307 = vmatprep.subr.mxu0 0.0
    %308 = vmatpush2.msra.mxu0 0.0
    %309 = vmatprep.subr.mxu0 0.0
    %310 = vmatpush2.msra.mxu0 0.0
    %311 = vmatprep.subr.mxu0 0.0
    %312 = vmatpush2.msra.mxu0 0.0
    %313 = vmatprep.subr.mxu0 0.0
    %314 = vmatpush2.msra.mxu0 0.0
    %315 = vmatprep.subr.mxu0 0.0
    %316 = vmatpush2.msra.mxu0 0.0
    %317 = vmatprep.subr.mxu0 0.0
    %318 = vmatpush2.msra.mxu0 0.0
    %319 = vmatprep.subr.mxu0 0.0
    %320 = vmatpush2.msra.mxu0 0.0
    %321 = vmatprep.subr.mxu0 0.0
    %322 = vmatpush2.msra.mxu0 0.0
    %323 = vmatprep.subr.mxu0 0.0
    %324 = vmatpush2.msra.mxu0 0.0
    %325 = vmatprep.subr.mxu0 0.0
    %326 = vmatpush2.msra.mxu0 0.0
    %327 = vmatprep.mubr.f32.mxu0 0.0
    %328 = vmatmul.mubr.f32.gmra.mxu0 %v92
    %v329 = vpop.f32.mrf.mxu0
    %v330 = vadd.f32 0.0, %v329
    %v331 = vpop.f32.mrf.mxu0
    %332 = vmatprep.mubr.f32.mxu0 0.0
    %333 = vmatmul.mubr.f32.gmra.mxu0 %v93
    %v334 = vpop.f32.mrf.mxu0
    %v335 = vadd.f32 0.0, %v334
    %v336 = vpop.f32.mrf.mxu0
    %337 = vmatprep.mubr.f32.mxu0 0.0
    %338 = vmatmul.mubr.f32.gmra.mxu0 %v94
    %v339 = vpop.f32.mrf.mxu0
    %v340 = vadd.f32 0.0, %v339
    %v341 = vpop.f32.mrf.mxu0
    %342 = vmatprep.mubr.f32.mxu0 0.0
    %343 = vmatmul.mubr.f32.gmra.mxu0 %v95
    %v344 = vpop.f32.mrf.mxu0
    %v345 = vadd.f32 0.0, %v344
    %v346 = vpop.f32.mrf.mxu0
    %347 = vdwg.mxu0
    %348 = vmatprep.subr.mxu0 0.0
    %349 = vmatpush1.msra.mxu0 %v245
    %350 = vmatprep.subr.mxu0 0.0
    %351 = vmatpush1.msra.mxu0 %v244
    %352 = vmatprep.subr.mxu0 0.0
    %353 = vmatpush1.msra.mxu0 %v243
    %354 = vmatprep.subr.mxu0 0.0
    %355 = vmatpush1.msra.mxu0 %v242
    %356 = vmatprep.subr.mxu0 0.0
    %357 = vmatpush1.msra.mxu0 %v241
    %358 = vmatprep.subr.mxu0 0.0
    %359 = vmatpush1.msra.mxu0 %v240
    %360 = vmatprep.subr.mxu0 0.0
    %361 = vmatpush1.msra.mxu0 %v239
    %362 = vmatprep.subr.mxu0 0.0
    %363 = vmatpush1.msra.mxu0 %v238
    %364 = vmatprep.subr.mxu0 0.0
    %365 = vmatpush1.msra.mxu0 %v237
    %366 = vmatprep.subr.mxu0 0.0
    %367 = vmatpush1.msra.mxu0 %v236
    %368 = vmatprep.subr.mxu0 0.0
    %369 = vmatpush1.msra.mxu0 %v235
    %370 = vmatprep.subr.mxu0 0.0
    %371 = vmatpush1.msra.mxu0 %v234
    %372 = vmatprep.subr.mxu0 0.0
    %373 = vmatpush1.msra.mxu0 %v233
    %374 = vmatprep.subr.mxu0 0.0
    %375 = vmatpush1.msra.mxu0 %v232
    %376 = vmatprep.subr.mxu0 0.0
    %377 = vmatpush1.msra.mxu0 %v231
    %378 = vmatprep.subr.mxu0 0.0
    %379 = vmatpush1.msra.mxu0 %v230
    %380 = vmatprep.subr.mxu0 0.0
    %381 = vmatpush2.msra.mxu0 0.0
    %382 = vmatprep.subr.mxu0 0.0
    %383 = vmatpush2.msra.mxu0 0.0
    %384 = vmatprep.subr.mxu0 0.0
    %385 = vmatpush2.msra.mxu0 0.0
    %386 = vmatprep.subr.mxu0 0.0
    %387 = vmatpush2.msra.mxu0 0.0
    %388 = vmatprep.subr.mxu0 0.0
    %389 = vmatpush2.msra.mxu0 0.0
    %390 = vmatprep.subr.mxu0 0.0
    %391 = vmatpush2.msra.mxu0 0.0
    %392 = vmatprep.subr.mxu0 0.0
    %393 = vmatpush2.msra.mxu0 0.0
    %394 = vmatprep.subr.mxu0 0.0
    %395 = vmatpush2.msra.mxu0 0.0
    %396 = vmatprep.subr.mxu0 0.0
    %397 = vmatpush2.msra.mxu0 0.0
    %398 = vmatprep.subr.mxu0 0.0
    %399 = vmatpush2.msra.mxu0 0.0
    %400 = vmatprep.subr.mxu0 0.0
    %401 = vmatpush2.msra.mxu0 0.0
    %402 = vmatprep.subr.mxu0 0.0
    %403 = vmatpush2.msra.mxu0 0.0
    %404 = vmatprep.subr.mxu0 0.0
    %405 = vmatpush2.msra.mxu0 0.0
    %406 = vmatprep.subr.mxu0 0.0
    %407 = vmatpush2.msra.mxu0 0.0
    %408 = vmatprep.subr.mxu0 0.0
    %409 = vmatpush2.msra.mxu0 0.0
    %410 = vmatprep.subr.mxu0 0.0
    %411 = vmatpush2.msra.mxu0 0.0
    %412 = vmatprep.mubr.f32.mxu0 0.0
    %413 = vmatmul.mubr.f32.gmra.mxu0 %v208
    %v414 = vpop.f32.mrf.mxu0
    %v415 = vadd.f32 %v330, %v414
    %v416 = vpop.f32.mrf.mxu0
    %417 = vmatprep.mubr.f32.mxu0 0.0
    %418 = vmatmul.mubr.f32.gmra.mxu0 %v209
    %v419 = vpop.f32.mrf.mxu0
    %v420 = vadd.f32 %v335, %v419
    %v421 = vpop.f32.mrf.mxu0
    %422 = vmatprep.mubr.f32.mxu0 0.0
    %423 = vmatmul.mubr.f32.gmra.mxu0 %v210
    %v424 = vpop.f32.mrf.mxu0
    %v425 = vadd.f32 %v340, %v424
    %v426 = vpop.f32.mrf.mxu0
    %427 = vmatprep.mubr.f32.mxu0 0.0
    %428 = vmatmul.mubr.f32.gmra.mxu0 %v211
    %v429 = vpop.f32.mrf.mxu0
    %v430 = vadd.f32 %v345, %v429
    %v431 = vpop.f32.mrf.mxu0
    %432 = vdwg.mxu0
    %s433 = scalar_lea.vmem [#allocation5], 256
    %v434 = vld [vmem:[%s433] sm:$0xff]
    %v435 = vld [vmem:[%s433 + $0x8] sm:$0xff]
    %v436 = vld [vmem:[%s433 + $0x10] sm:$0xff]
    %v437 = vld [vmem:[%s433 + $0x18] sm:$0xff]
    %v438 = vld [vmem:[%s433 + $0x20] sm:$0xff]
    %v439 = vld [vmem:[%s433 + $0x28] sm:$0xff]
    %v440 = vld [vmem:[%s433 + $0x30] sm:$0xff]
    %v441 = vld [vmem:[%s433 + $0x38] sm:$0xff]
    %v442 = vld [vmem:[%s433 + $0x40] sm:$0xff]
    %v443 = vld [vmem:[%s433 + $0x48] sm:$0xff]
    %v444 = vld [vmem:[%s433 + $0x50] sm:$0xff]
    %v445 = vld [vmem:[%s433 + $0x58] sm:$0xff]
    %v446 = vld [vmem:[%s433 + $0x60] sm:$0xff]
    %v447 = vld [vmem:[%s433 + $0x68] sm:$0xff]
    %v448 = vld [vmem:[%s433 + $0x70] sm:$0xff]
    %v449 = vld [vmem:[%s433 + $0x78] sm:$0xff]
    %450 = vmatprep.subr.mxu0 0.0
    %451 = vmatpush1.msra.mxu0 %v449
    %452 = vmatprep.subr.mxu0 0.0
    %453 = vmatpush1.msra.mxu0 %v448
    %454 = vmatprep.subr.mxu0 0.0
    %455 = vmatpush1.msra.mxu0 %v447
    %456 = vmatprep.subr.mxu0 0.0
    %457 = vmatpush1.msra.mxu0 %v446
    %458 = vmatprep.subr.mxu0 0.0
    %459 = vmatpush1.msra.mxu0 %v445
    %460 = vmatprep.subr.mxu0 0.0
    %461 = vmatpush1.msra.mxu0 %v444
    %462 = vmatprep.subr.mxu0 0.0
    %463 = vmatpush1.msra.mxu0 %v443
    %464 = vmatprep.subr.mxu0 0.0
    %465 = vmatpush1.msra.mxu0 %v442
    %466 = vmatprep.subr.mxu0 0.0
    %467 = vmatpush1.msra.mxu0 %v441
    %468 = vmatprep.subr.mxu0 0.0
    %469 = vmatpush1.msra.mxu0 %v440
    %470 = vmatprep.subr.mxu0 0.0
    %471 = vmatpush1.msra.mxu0 %v439
    %472 = vmatprep.subr.mxu0 0.0
    %473 = vmatpush1.msra.mxu0 %v438
    %474 = vmatprep.subr.mxu0 0.0
    %475 = vmatpush1.msra.mxu0 %v437
    %476 = vmatprep.subr.mxu0 0.0
    %477 = vmatpush1.msra.mxu0 %v436
    %478 = vmatprep.subr.mxu0 0.0
    %479 = vmatpush1.msra.mxu0 %v435
    %480 = vmatprep.subr.mxu0 0.0
    %481 = vmatpush1.msra.mxu0 %v434
    %482 = vmatprep.subr.mxu0 0.0
    %483 = vmatpush2.msra.mxu0 0.0
    %484 = vmatprep.subr.mxu0 0.0
    %485 = vmatpush2.msra.mxu0 0.0
    %486 = vmatprep.subr.mxu0 0.0
    %487 = vmatpush2.msra.mxu0 0.0
    %488 = vmatprep.subr.mxu0 0.0
    %489 = vmatpush2.msra.mxu0 0.0
    %490 = vmatprep.subr.mxu0 0.0
    %491 = vmatpush2.msra.mxu0 0.0
    %492 = vmatprep.subr.mxu0 0.0
    %493 = vmatpush2.msra.mxu0 0.0
    %494 = vmatprep.subr.mxu0 0.0
    %495 = vmatpush2.msra.mxu0 0.0
    %496 = vmatprep.subr.mxu0 0.0
    %497 = vmatpush2.msra.mxu0 0.0
    %498 = vmatprep.subr.mxu0 0.0
    %499 = vmatpush2.msra.mxu0 0.0
    %500 = vmatprep.subr.mxu0 0.0
    %501 = vmatpush2.msra.mxu0 0.0
    %502 = vmatprep.subr.mxu0 0.0
    %503 = vmatpush2.msra.mxu0 0.0
    %504 = vmatprep.subr.mxu0 0.0
    %505 = vmatpush2.msra.mxu0 0.0
    %506 = vmatprep.subr.mxu0 0.0
    %507 = vmatpush2.msra.mxu0 0.0
    %508 = vmatprep.subr.mxu0 0.0
    %509 = vmatpush2.msra.mxu0 0.0
    %510 = vmatprep.subr.mxu0 0.0
    %511 = vmatpush2.msra.mxu0 0.0
    %512 = vmatprep.subr.mxu0 0.0
    %513 = vmatpush2.msra.mxu0 0.0
    %514 = vmatprep.mubr.f32.mxu0 0.0
    %515 = vmatmul.mubr.f32.gmra.mxu0 %v226
    %v516 = vpop.f32.mrf.mxu0
    %v517 = vadd.f32 0.0, %v516
    %v518 = vpop.f32.mrf.mxu0
    %519 = vmatprep.mubr.f32.mxu0 0.0
    %520 = vmatmul.mubr.f32.gmra.mxu0 %v227
    %v521 = vpop.f32.mrf.mxu0
    %v522 = vadd.f32 0.0, %v521
    %v523 = vpop.f32.mrf.mxu0
    %524 = vmatprep.mubr.f32.mxu0 0.0
    %525 = vmatmul.mubr.f32.gmra.mxu0 %v228
    %v526 = vpop.f32.mrf.mxu0
    %v527 = vadd.f32 0.0, %v526
    %v528 = vpop.f32.mrf.mxu0
    %529 = vmatprep.mubr.f32.mxu0 0.0
    %530 = vmatmul.mubr.f32.gmra.mxu0 %v229
    %v531 = vpop.f32.mrf.mxu0
    %v532 = vadd.f32 0.0, %v531
    %v533 = vpop.f32.mrf.mxu0
    %534 = vdwg.mxu0
    %v535 = vadd.f32 %v415, %v517
    %v536 = vadd.f32 %v420, %v522
    %v537 = vadd.f32 %v425, %v527
    %v538 = vadd.f32 %v430, %v532
    %v539 = vadd.f32 %v535, %v536
    %v540 = vadd.f32 %v539, %v537
    %v541 = vadd.f32 %v540, %v538
    %v542 = vrot.slane %v541, 4
    %v543 = vadd.f32 %v541, %v542
    %v544 = vrot.slane %v543, 2
    %v545 = vadd.f32 %v543, %v544
    %v546 = vrot.slane %v545, 1
    %v547 = vadd.f32 %v545, %v546
    %v548 = vmul.f32 %v535, %v535
    %v549 = vmul.f32 %v536, %v536
    %v550 = vmul.f32 %v537, %v537
    %v551 = vmul.f32 %v538, %v538
    %v552 = vadd.f32 %v548, %v549
    %v553 = vadd.f32 %v552, %v550
    %v554 = vadd.f32 %v553, %v551
    %v555 = vrot.slane %v554, 4
    %v556 = vadd.f32 %v554, %v555
    %v557 = vrot.slane %v556, 2
    %v558 = vadd.f32 %v556, %v557
    %v559 = vrot.slane %v558, 1
    %v560 = vadd.f32 %v558, %v559
    %v561 = vsel %vm196, %v547, %v560
    %562 = vmatprep.subr.mxu0 0.0
    %563 = vmatpush1.msra.mxu0 %v189
    %564 = vmatprep.subr.mxu0 0.0
    %565 = vmatpush1.msra.mxu0 %v188
    %566 = vmatprep.subr.mxu0 0.0
    %567 = vmatpush1.msra.mxu0 %v187
    %568 = vmatprep.subr.mxu0 0.0
    %569 = vmatpush1.msra.mxu0 %v186
    %570 = vmatprep.subr.mxu0 0.0
    %571 = vmatpush1.msra.mxu0 %v185
    %572 = vmatprep.subr.mxu0 0.0
    %573 = vmatpush1.msra.mxu0 %v184
    %574 = vmatprep.subr.mxu0 0.0
    %575 = vmatpush1.msra.mxu0 %v183
    %576 = vmatprep.subr.mxu0 0.0
    %577 = vmatpush1.msra.mxu0 %v182
    %578 = vmatprep.subr.mxu0 0.0
    %579 = vmatpush1.msra.mxu0 %v181
    %580 = vmatprep.subr.mxu0 0.0
    %581 = vmatpush1.msra.mxu0 %v180
    %582 = vmatprep.subr.mxu0 0.0
    %583 = vmatpush1.msra.mxu0 %v179
    %584 = vmatprep.subr.mxu0 0.0
    %585 = vmatpush1.msra.mxu0 %v178
    %586 = vmatprep.subr.mxu0 0.0
    %587 = vmatpush1.msra.mxu0 %v177
    %588 = vmatprep.subr.mxu0 0.0
    %589 = vmatpush1.msra.mxu0 %v176
    %590 = vmatprep.subr.mxu0 0.0
    %591 = vmatpush1.msra.mxu0 %v175
    %592 = vmatprep.subr.mxu0 0.0
    %593 = vmatpush1.msra.mxu0 %v174
    %594 = vmatprep.subr.mxu0 0.0
    %595 = vmatpush2.msra.mxu0 0.0
    %596 = vmatprep.subr.mxu0 0.0
    %597 = vmatpush2.msra.mxu0 0.0
    %598 = vmatprep.subr.mxu0 0.0
    %599 = vmatpush2.msra.mxu0 0.0
    %600 = vmatprep.subr.mxu0 0.0
    %601 = vmatpush2.msra.mxu0 0.0
    %602 = vmatprep.subr.mxu0 0.0
    %603 = vmatpush2.msra.mxu0 0.0
    %604 = vmatprep.subr.mxu0 0.0
    %605 = vmatpush2.msra.mxu0 0.0
    %606 = vmatprep.subr.mxu0 0.0
    %607 = vmatpush2.msra.mxu0 0.0
    %608 = vmatprep.subr.mxu0 0.0
    %609 = vmatpush2.msra.mxu0 0.0
    %610 = vmatprep.subr.mxu0 0.0
    %611 = vmatpush2.msra.mxu0 0.0
    %612 = vmatprep.subr.mxu0 0.0
    %613 = vmatpush2.msra.mxu0 0.0
    %614 = vmatprep.subr.mxu0 0.0
    %615 = vmatpush2.msra.mxu0 0.0
    %616 = vmatprep.subr.mxu0 0.0
    %617 = vmatpush2.msra.mxu0 0.0
    %618 = vmatprep.subr.mxu0 0.0
    %619 = vmatpush2.msra.mxu0 0.0
    %620 = vmatprep.subr.mxu0 0.0
    %621 = vmatpush2.msra.mxu0 0.0
    %622 = vmatprep.subr.mxu0 0.0
    %623 = vmatpush2.msra.mxu0 0.0
    %624 = vmatprep.subr.mxu0 0.0
    %625 = vmatpush2.msra.mxu0 0.0
    %626 = vmatprep.mubr.f32.mxu0 0.0
    %627 = vmatmul.mubr.f32.gmra.mxu0 %v561
    %v628 = vpop.f32.mrf.mxu0
    %v629 = vadd.f32 0.0, %v628
    %v630 = vpop.f32.mrf.mxu0
    %631 = vdwg.mxu0
    %v632 = vmul.f32 %v629, %v629
    %v634 = vrot.slane %v632, 7
    %v636 = vsub.f32 %v629, %v634
    %v637 = vmax.f32 %v636, 0.0
    %v638 = vadd.f32 %v637, 1e-05
    %v639 = vrsqrt.pop %v638
    %v641 = vrot.slane %v173, 7
    %v643 = vmul.f32 %v639, %v641
    %v645 = vrot.slane %v643, 1
    %v647 = vmul.f32 %v629, %v645
    %v649 = vrot.slane %v647, 7
    %v651 = vsub.f32 %v173, %v649
    %v652 = vlaneseq
    %v653 = vshrl.u32 %v652, 7
    %v654 = vsub.s32 1, %v653
    %v655 = vrot.slane %v643, %v654
    %v656 = vmul.f32 %v535, %v655
    %v657 = vmul.f32 %v536, %v655
    %v658 = vmul.f32 %v537, %v655
    %v659 = vmul.f32 %v538, %v655
    %v660 = vlaneseq
    %v661 = vshrl.u32 %v660, 7
    %v662 = vsub.s32 1, %v661
    %v663 = vrot.slane %v651, %v662
    %v664 = vadd.f32 %v656, %v663
    %v665 = vadd.f32 %v657, %v663
    %v666 = vadd.f32 %v658, %v663
    %v667 = vadd.f32 %v659, %v663
    %v668 = vmax.f32 %v664, 0.0
    %v669 = vmax.f32 %v665, 0.0
    %v670 = vmax.f32 %v666, 0.0
    %v671 = vmax.f32 %v667, 0.0
    %v673 = vrot.slane %v671, 7
    %v678 = vrot.slane %v668, 7
    %v679 = vrot.slane %v669, 7
    %v680 = vsel %vm196, %v678, %v679
    %v681 = vrot.slane %v670, 7
    %v682 = vsel %vm196, %v679, %v681
    %v683 = vsel %vm196, %v681, %v673
    %v688 = vsel %vm196, %v673, %v678
    %v689 = vmul.f32 %v157, %v688
    %v690 = vmul.f32 %v158, %v680
    %v691 = vmul.f32 %v159, %v682
    %v692 = vmul.f32 %v160, %v683
    %v693 = vrot.slane %v668, 1
    %v694 = vrot.slane %v669, 1
    %v695 = vsel %vm212, %v693, %v694
    %v696 = vrot.slane %v670, 1
    %v697 = vsel %vm212, %v694, %v696
    %v698 = vrot.slane %v671, 1
    %v699 = vsel %vm212, %v696, %v698
    %v705 = vsel %vm212, %v698, %v693
    %v706 = vmul.f32 %v169, %v695
    %v707 = vmul.f32 %v170, %v697
    %v708 = vmul.f32 %v171, %v699
    %v709 = vmul.f32 %v172, %v705
    %v710 = vld [vmem:[#allocation7] sm:$0xff]
    %v711 = vld [vmem:[#allocation7 + $0x8] sm:$0xff]
    %v712 = vld [vmem:[#allocation7 + $0x10] sm:$0xff]
    %v713 = vld [vmem:[#allocation7 + $0x18] sm:$0xff]
    %v714 = vld [vmem:[#allocation7 + $0x20] sm:$0xff]
    %v715 = vld [vmem:[#allocation7 + $0x28] sm:$0xff]
    %v716 = vld [vmem:[#allocation7 + $0x30] sm:$0xff]
    %v717 = vld [vmem:[#allocation7 + $0x38] sm:$0xff]
    %v718 = vld [vmem:[#allocation7 + $0x40] sm:$0xff]
    %v719 = vld [vmem:[#allocation7 + $0x48] sm:$0xff]
    %v720 = vld [vmem:[#allocation7 + $0x50] sm:$0xff]
    %v721 = vld [vmem:[#allocation7 + $0x58] sm:$0xff]
    %v722 = vld [vmem:[#allocation7 + $0x60] sm:$0xff]
    %v723 = vld [vmem:[#allocation7 + $0x68] sm:$0xff]
    %v724 = vld [vmem:[#allocation7 + $0x70] sm:$0xff]
    %v725 = vld [vmem:[#allocation7 + $0x78] sm:$0xff]
    %s726 = scalar_lea.vmem [#allocation7], 128
    %v727 = vld [vmem:[%s726] sm:$0xff]
    %v728 = vld [vmem:[%s726 + $0x8] sm:$0xff]
    %v729 = vld [vmem:[%s726 + $0x10] sm:$0xff]
    %v730 = vld [vmem:[%s726 + $0x18] sm:$0xff]
    %v731 = vld [vmem:[%s726 + $0x20] sm:$0xff]
    %v732 = vld [vmem:[%s726 + $0x28] sm:$0xff]
    %v733 = vld [vmem:[%s726 + $0x30] sm:$0xff]
    %v734 = vld [vmem:[%s726 + $0x38] sm:$0xff]
    %v735 = vld [vmem:[%s726 + $0x40] sm:$0xff]
    %v736 = vld [vmem:[%s726 + $0x48] sm:$0xff]
    %v737 = vld [vmem:[%s726 + $0x50] sm:$0xff]
    %v738 = vld [vmem:[%s726 + $0x58] sm:$0xff]
    %v739 = vld [vmem:[%s726 + $0x60] sm:$0xff]
    %v740 = vld [vmem:[%s726 + $0x68] sm:$0xff]
    %v741 = vld [vmem:[%s726 + $0x70] sm:$0xff]
    %v742 = vld [vmem:[%s726 + $0x78] sm:$0xff]
    %743 = vmatprep.subr.mxu0 0.0
    %744 = vmatpush1.msra.mxu0 %v742
    %745 = vmatprep.subr.mxu0 0.0
    %746 = vmatpush1.msra.mxu0 %v741
    %747 = vmatprep.subr.mxu0 0.0
    %748 = vmatpush1.msra.mxu0 %v740
    %749 = vmatprep.subr.mxu0 0.0
    %750 = vmatpush1.msra.mxu0 %v739
    %751 = vmatprep.subr.mxu0 0.0
    %752 = vmatpush1.msra.mxu0 %v738
    %753 = vmatprep.subr.mxu0 0.0
    %754 = vmatpush1.msra.mxu0 %v737
    %755 = vmatprep.subr.mxu0 0.0
    %756 = vmatpush1.msra.mxu0 %v736
    %757 = vmatprep.subr.mxu0 0.0
    %758 = vmatpush1.msra.mxu0 %v735
    %759 = vmatprep.subr.mxu0 0.0
    %760 = vmatpush1.msra.mxu0 %v734
    %761 = vmatprep.subr.mxu0 0.0
    %762 = vmatpush1.msra.mxu0 %v733
    %763 = vmatprep.subr.mxu0 0.0
    %764 = vmatpush1.msra.mxu0 %v732
    %765 = vmatprep.subr.mxu0 0.0
    %766 = vmatpush1.msra.mxu0 %v731
    %767 = vmatprep.subr.mxu0 0.0
    %768 = vmatpush1.msra.mxu0 %v730
    %769 = vmatprep.subr.mxu0 0.0
    %770 = vmatpush1.msra.mxu0 %v729
    %771 = vmatprep.subr.mxu0 0.0
    %772 = vmatpush1.msra.mxu0 %v728
    %773 = vmatprep.subr.mxu0 0.0
    %774 = vmatpush1.msra.mxu0 %v727
    %775 = vmatprep.subr.mxu0 0.0
    %776 = vmatpush2.msra.mxu0 0.0
    %777 = vmatprep.subr.mxu0 0.0
    %778 = vmatpush2.msra.mxu0 0.0
    %779 = vmatprep.subr.mxu0 0.0
    %780 = vmatpush2.msra.mxu0 0.0
    %781 = vmatprep.subr.mxu0 0.0
    %782 = vmatpush2.msra.mxu0 0.0
    %783 = vmatprep.subr.mxu0 0.0
    %784 = vmatpush2.msra.mxu0 0.0
    %785 = vmatprep.subr.mxu0 0.0
    %786 = vmatpush2.msra.mxu0 0.0
    %787 = vmatprep.subr.mxu0 0.0
    %788 = vmatpush2.msra.mxu0 0.0
    %789 = vmatprep.subr.mxu0 0.0
    %790 = vmatpush2.msra.mxu0 0.0
    %791 = vmatprep.subr.mxu0 0.0
    %792 = vmatpush2.msra.mxu0 0.0
    %793 = vmatprep.subr.mxu0 0.0
    %794 = vmatpush2.msra.mxu0 0.0
    %795 = vmatprep.subr.mxu0 0.0
    %796 = vmatpush2.msra.mxu0 0.0
    %797 = vmatprep.subr.mxu0 0.0
    %798 = vmatpush2.msra.mxu0 0.0
    %799 = vmatprep.subr.mxu0 0.0
    %800 = vmatpush2.msra.mxu0 0.0
    %801 = vmatprep.subr.mxu0 0.0
    %802 = vmatpush2.msra.mxu0 0.0
    %803 = vmatprep.subr.mxu0 0.0
    %804 = vmatpush2.msra.mxu0 0.0
    %805 = vmatprep.subr.mxu0 0.0
    %806 = vmatpush2.msra.mxu0 0.0
    %807 = vmatprep.mubr.f32.mxu0 0.0
    %808 = vmatmul.mubr.f32.gmra.mxu0 %v668
    %v809 = vpop.f32.mrf.mxu0
    %v810 = vadd.f32 0.0, %v809
    %v811 = vpop.f32.mrf.mxu0
    %812 = vmatprep.mubr.f32.mxu0 0.0
    %813 = vmatmul.mubr.f32.gmra.mxu0 %v669
    %v814 = vpop.f32.mrf.mxu0
    %v815 = vadd.f32 0.0, %v814
    %v816 = vpop.f32.mrf.mxu0
    %817 = vmatprep.mubr.f32.mxu0 0.0
    %818 = vmatmul.mubr.f32.gmra.mxu0 %v670
    %v819 = vpop.f32.mrf.mxu0
    %v820 = vadd.f32 0.0, %v819
    %v821 = vpop.f32.mrf.mxu0
    %822 = vmatprep.mubr.f32.mxu0 0.0
    %823 = vmatmul.mubr.f32.gmra.mxu0 %v671
    %v824 = vpop.f32.mrf.mxu0
    %v825 = vadd.f32 0.0, %v824
    %v826 = vpop.f32.mrf.mxu0
    %827 = vdwg.mxu0
    %828 = vmatprep.subr.mxu0 0.0
    %829 = vmatpush1.msra.mxu0 %v725
    %830 = vmatprep.subr.mxu0 0.0
    %831 = vmatpush1.msra.mxu0 %v724
    %832 = vmatprep.subr.mxu0 0.0
    %833 = vmatpush1.msra.mxu0 %v723
    %834 = vmatprep.subr.mxu0 0.0
    %835 = vmatpush1.msra.mxu0 %v722
    %836 = vmatprep.subr.mxu0 0.0
    %837 = vmatpush1.msra.mxu0 %v721
    %838 = vmatprep.subr.mxu0 0.0
    %839 = vmatpush1.msra.mxu0 %v720
    %840 = vmatprep.subr.mxu0 0.0
    %841 = vmatpush1.msra.mxu0 %v719
    %842 = vmatprep.subr.mxu0 0.0
    %843 = vmatpush1.msra.mxu0 %v718
    %844 = vmatprep.subr.mxu0 0.0
    %845 = vmatpush1.msra.mxu0 %v717
    %846 = vmatprep.subr.mxu0 0.0
    %847 = vmatpush1.msra.mxu0 %v716
    %848 = vmatprep.subr.mxu0 0.0
    %849 = vmatpush1.msra.mxu0 %v715
    %850 = vmatprep.subr.mxu0 0.0
    %851 = vmatpush1.msra.mxu0 %v714
    %852 = vmatprep.subr.mxu0 0.0
    %853 = vmatpush1.msra.mxu0 %v713
    %854 = vmatprep.subr.mxu0 0.0
    %855 = vmatpush1.msra.mxu0 %v712
    %856 = vmatprep.subr.mxu0 0.0
    %857 = vmatpush1.msra.mxu0 %v711
    %858 = vmatprep.subr.mxu0 0.0
    %859 = vmatpush1.msra.mxu0 %v710
    %860 = vmatprep.subr.mxu0 0.0
    %861 = vmatpush2.msra.mxu0 0.0
    %862 = vmatprep.subr.mxu0 0.0
    %863 = vmatpush2.msra.mxu0 0.0
    %864 = vmatprep.subr.mxu0 0.0
    %865 = vmatpush2.msra.mxu0 0.0
    %866 = vmatprep.subr.mxu0 0.0
    %867 = vmatpush2.msra.mxu0 0.0
    %868 = vmatprep.subr.mxu0 0.0
    %869 = vmatpush2.msra.mxu0 0.0
    %870 = vmatprep.subr.mxu0 0.0
    %871 = vmatpush2.msra.mxu0 0.0
    %872 = vmatprep.subr.mxu0 0.0
    %873 = vmatpush2.msra.mxu0 0.0
    %874 = vmatprep.subr.mxu0 0.0
    %875 = vmatpush2.msra.mxu0 0.0
    %876 = vmatprep.subr.mxu0 0.0
    %877 = vmatpush2.msra.mxu0 0.0
    %878 = vmatprep.subr.mxu0 0.0
    %879 = vmatpush2.msra.mxu0 0.0
    %880 = vmatprep.subr.mxu0 0.0
    %881 = vmatpush2.msra.mxu0 0.0
    %882 = vmatprep.subr.mxu0 0.0
    %883 = vmatpush2.msra.mxu0 0.0
    %884 = vmatprep.subr.mxu0 0.0
    %885 = vmatpush2.msra.mxu0 0.0
    %886 = vmatprep.subr.mxu0 0.0
    %887 = vmatpush2.msra.mxu0 0.0
    %888 = vmatprep.subr.mxu0 0.0
    %889 = vmatpush2.msra.mxu0 0.0
    %890 = vmatprep.subr.mxu0 0.0
    %891 = vmatpush2.msra.mxu0 0.0
    %892 = vmatprep.mubr.f32.mxu0 0.0
    %893 = vmatmul.mubr.f32.gmra.mxu0 %v689
    %v894 = vpop.f32.mrf.mxu0
    %v895 = vadd.f32 %v810, %v894
    %v896 = vpop.f32.mrf.mxu0
    %897 = vmatprep.mubr.f32.mxu0 0.0
    %898 = vmatmul.mubr.f32.gmra.mxu0 %v690
    %v899 = vpop.f32.mrf.mxu0
    %v900 = vadd.f32 %v815, %v899
    %v901 = vpop.f32.mrf.mxu0
    %902 = vmatprep.mubr.f32.mxu0 0.0
    %903 = vmatmul.mubr.f32.gmra.mxu0 %v691
    %v904 = vpop.f32.mrf.mxu0
    %v905 = vadd.f32 %v820, %v904
    %v906 = vpop.f32.mrf.mxu0
    %907 = vmatprep.mubr.f32.mxu0 0.0
    %908 = vmatmul.mubr.f32.gmra.mxu0 %v692
    %v909 = vpop.f32.mrf.mxu0
    %v910 = vadd.f32 %v825, %v909
    %v911 = vpop.f32.mrf.mxu0
    %912 = vdwg.mxu0
    %s913 = scalar_lea.vmem [#allocation7], 256
    %v914 = vld [vmem:[%s913] sm:$0xff]
    %v915 = vld [vmem:[%s913 + $0x8] sm:$0xff]
    %v916 = vld [vmem:[%s913 + $0x10] sm:$0xff]
    %v917 = vld [vmem:[%s913 + $0x18] sm:$0xff]
    %v918 = vld [vmem:[%s913 + $0x20] sm:$0xff]
    %v919 = vld [vmem:[%s913 + $0x28] sm:$0xff]
    %v920 = vld [vmem:[%s913 + $0x30] sm:$0xff]
    %v921 = vld [vmem:[%s913 + $0x38] sm:$0xff]
    %v922 = vld [vmem:[%s913 + $0x40] sm:$0xff]
    %v923 = vld [vmem:[%s913 + $0x48] sm:$0xff]
    %v924 = vld [vmem:[%s913 + $0x50] sm:$0xff]
    %v925 = vld [vmem:[%s913 + $0x58] sm:$0xff]
    %v926 = vld [vmem:[%s913 + $0x60] sm:$0xff]
    %v927 = vld [vmem:[%s913 + $0x68] sm:$0xff]
    %v928 = vld [vmem:[%s913 + $0x70] sm:$0xff]
    %v929 = vld [vmem:[%s913 + $0x78] sm:$0xff]
    %930 = vmatprep.subr.mxu0 0.0
    %931 = vmatpush1.msra.mxu0 %v929
    %932 = vmatprep.subr.mxu0 0.0
    %933 = vmatpush1.msra.mxu0 %v928
    %934 = vmatprep.subr.mxu0 0.0
    %935 = vmatpush1.msra.mxu0 %v927
    %936 = vmatprep.subr.mxu0 0.0
    %937 = vmatpush1.msra.mxu0 %v926
    %938 = vmatprep.subr.mxu0 0.0
    %939 = vmatpush1.msra.mxu0 %v925
    %940 = vmatprep.subr.mxu0 0.0
    %941 = vmatpush1.msra.mxu0 %v924
    %942 = vmatprep.subr.mxu0 0.0
    %943 = vmatpush1.msra.mxu0 %v923
    %944 = vmatprep.subr.mxu0 0.0
    %945 = vmatpush1.msra.mxu0 %v922
    %946 = vmatprep.subr.mxu0 0.0
    %947 = vmatpush1.msra.mxu0 %v921
    %948 = vmatprep.subr.mxu0 0.0
    %949 = vmatpush1.msra.mxu0 %v920
    %950 = vmatprep.subr.mxu0 0.0
    %951 = vmatpush1.msra.mxu0 %v919
    %952 = vmatprep.subr.mxu0 0.0
    %953 = vmatpush1.msra.mxu0 %v918
    %954 = vmatprep.subr.mxu0 0.0
    %955 = vmatpush1.msra.mxu0 %v917
    %956 = vmatprep.subr.mxu0 0.0
    %957 = vmatpush1.msra.mxu0 %v916
    %958 = vmatprep.subr.mxu0 0.0
    %959 = vmatpush1.msra.mxu0 %v915
    %960 = vmatprep.subr.mxu0 0.0
    %961 = vmatpush1.msra.mxu0 %v914
    %962 = vmatprep.subr.mxu0 0.0
    %963 = vmatpush2.msra.mxu0 0.0
    %964 = vmatprep.subr.mxu0 0.0
    %965 = vmatpush2.msra.mxu0 0.0
    %966 = vmatprep.subr.mxu0 0.0
    %967 = vmatpush2.msra.mxu0 0.0
    %968 = vmatprep.subr.mxu0 0.0
    %969 = vmatpush2.msra.mxu0 0.0
    %970 = vmatprep.subr.mxu0 0.0
    %971 = vmatpush2.msra.mxu0 0.0
    %972 = vmatprep.subr.mxu0 0.0
    %973 = vmatpush2.msra.mxu0 0.0
    %974 = vmatprep.subr.mxu0 0.0
    %975 = vmatpush2.msra.mxu0 0.0
    %976 = vmatprep.subr.mxu0 0.0
    %977 = vmatpush2.msra.mxu0 0.0
    %978 = vmatprep.subr.mxu0 0.0
    %979 = vmatpush2.msra.mxu0 0.0
    %980 = vmatprep.subr.mxu0 0.0
    %981 = vmatpush2.msra.mxu0 0.0
    %982 = vmatprep.subr.mxu0 0.0
    %983 = vmatpush2.msra.mxu0 0.0
    %984 = vmatprep.subr.mxu0 0.0
    %985 = vmatpush2.msra.mxu0 0.0
    %986 = vmatprep.subr.mxu0 0.0
    %987 = vmatpush2.msra.mxu0 0.0
    %988 = vmatprep.subr.mxu0 0.0
    %989 = vmatpush2.msra.mxu0 0.0
    %990 = vmatprep.subr.mxu0 0.0
    %991 = vmatpush2.msra.mxu0 0.0
    %992 = vmatprep.subr.mxu0 0.0
    %993 = vmatpush2.msra.mxu0 0.0
    %994 = vmatprep.mubr.f32.mxu0 0.0
    %995 = vmatmul.mubr.f32.gmra.mxu0 %v706
    %v996 = vpop.f32.mrf.mxu0
    %v997 = vadd.f32 0.0, %v996
    %v998 = vpop.f32.mrf.mxu0
    %999 = vmatprep.mubr.f32.mxu0 0.0
    %1000 = vmatmul.mubr.f32.gmra.mxu0 %v707
    %v1001 = vpop.f32.mrf.mxu0
    %v1002 = vadd.f32 0.0, %v1001
    %v1003 = vpop.f32.mrf.mxu0
    %1004 = vmatprep.mubr.f32.mxu0 0.0
    %1005 = vmatmul.mubr.f32.gmra.mxu0 %v708
    %v1006 = vpop.f32.mrf.mxu0
    %v1007 = vadd.f32 0.0, %v1006
    %v1008 = vpop.f32.mrf.mxu0
    %1009 = vmatprep.mubr.f32.mxu0 0.0
    %1010 = vmatmul.mubr.f32.gmra.mxu0 %v709
    %v1011 = vpop.f32.mrf.mxu0
    %v1012 = vadd.f32 0.0, %v1011
    %v1013 = vpop.f32.mrf.mxu0
    %1014 = vdwg.mxu0
    %v1015 = vadd.f32 %v895, %v997
    %v1016 = vadd.f32 %v900, %v1002
    %v1017 = vadd.f32 %v905, %v1007
    %v1018 = vadd.f32 %v910, %v1012
    %v1019 = vadd.f32 %v1015, %v1016
    %v1020 = vadd.f32 %v1019, %v1017
    %v1021 = vadd.f32 %v1020, %v1018
    %v1022 = vrot.slane %v1021, 4
    %v1023 = vadd.f32 %v1021, %v1022
    %v1024 = vrot.slane %v1023, 2
    %v1025 = vadd.f32 %v1023, %v1024
    %v1026 = vrot.slane %v1025, 1
    %v1027 = vadd.f32 %v1025, %v1026
    %v1028 = vmul.f32 %v1015, %v1015
    %v1029 = vmul.f32 %v1016, %v1016
    %v1030 = vmul.f32 %v1017, %v1017
    %v1031 = vmul.f32 %v1018, %v1018
    %v1032 = vadd.f32 %v1028, %v1029
    %v1033 = vadd.f32 %v1032, %v1030
    %v1034 = vadd.f32 %v1033, %v1031
    %v1035 = vrot.slane %v1034, 4
    %v1036 = vadd.f32 %v1034, %v1035
    %v1037 = vrot.slane %v1036, 2
    %v1038 = vadd.f32 %v1036, %v1037
    %v1039 = vrot.slane %v1038, 1
    %v1040 = vadd.f32 %v1038, %v1039
    %v1041 = vsel %vm196, %v1027, %v1040
    %1042 = vmatprep.subr.mxu0 0.0
    %1043 = vmatpush1.msra.mxu0 %v189
    %1044 = vmatprep.subr.mxu0 0.0
    %1045 = vmatpush1.msra.mxu0 %v188
    %1046 = vmatprep.subr.mxu0 0.0
    %1047 = vmatpush1.msra.mxu0 %v187
    %1048 = vmatprep.subr.mxu0 0.0
    %1049 = vmatpush1.msra.mxu0 %v186
    %1050 = vmatprep.subr.mxu0 0.0
    %1051 = vmatpush1.msra.mxu0 %v185
    %1052 = vmatprep.subr.mxu0 0.0
    %1053 = vmatpush1.msra.mxu0 %v184
    %1054 = vmatprep.subr.mxu0 0.0
    %1055 = vmatpush1.msra.mxu0 %v183
    %1056 = vmatprep.subr.mxu0 0.0
    %1057 = vmatpush1.msra.mxu0 %v182
    %1058 = vmatprep.subr.mxu0 0.0
    %1059 = vmatpush1.msra.mxu0 %v181
    %1060 = vmatprep.subr.mxu0 0.0
    %1061 = vmatpush1.msra.mxu0 %v180
    %1062 = vmatprep.subr.mxu0 0.0
    %1063 = vmatpush1.msra.mxu0 %v179
    %1064 = vmatprep.subr.mxu0 0.0
    %1065 = vmatpush1.msra.mxu0 %v178
    %1066 = vmatprep.subr.mxu0 0.0
    %1067 = vmatpush1.msra.mxu0 %v177
    %1068 = vmatprep.subr.mxu0 0.0
    %1069 = vmatpush1.msra.mxu0 %v176
    %1070 = vmatprep.subr.mxu0 0.0
    %1071 = vmatpush1.msra.mxu0 %v175
    %1072 = vmatprep.subr.mxu0 0.0
    %1073 = vmatpush1.msra.mxu0 %v174
    %1074 = vmatprep.subr.mxu0 0.0
    %1075 = vmatpush2.msra.mxu0 0.0
    %1076 = vmatprep.subr.mxu0 0.0
    %1077 = vmatpush2.msra.mxu0 0.0
    %1078 = vmatprep.subr.mxu0 0.0
    %1079 = vmatpush2.msra.mxu0 0.0
    %1080 = vmatprep.subr.mxu0 0.0
    %1081 = vmatpush2.msra.mxu0 0.0
    %1082 = vmatprep.subr.mxu0 0.0
    %1083 = vmatpush2.msra.mxu0 0.0
    %1084 = vmatprep.subr.mxu0 0.0
    %1085 = vmatpush2.msra.mxu0 0.0
    %1086 = vmatprep.subr.mxu0 0.0
    %1087 = vmatpush2.msra.mxu0 0.0
    %1088 = vmatprep.subr.mxu0 0.0
    %1089 = vmatpush2.msra.mxu0 0.0
    %1090 = vmatprep.subr.mxu0 0.0
    %1091 = vmatpush2.msra.mxu0 0.0
    %1092 = vmatprep.subr.mxu0 0.0
    %1093 = vmatpush2.msra.mxu0 0.0
    %1094 = vmatprep.subr.mxu0 0.0
    %1095 = vmatpush2.msra.mxu0 0.0
    %1096 = vmatprep.subr.mxu0 0.0
    %1097 = vmatpush2.msra.mxu0 0.0
    %1098 = vmatprep.subr.mxu0 0.0
    %1099 = vmatpush2.msra.mxu0 0.0
    %1100 = vmatprep.subr.mxu0 0.0
    %1101 = vmatpush2.msra.mxu0 0.0
    %1102 = vmatprep.subr.mxu0 0.0
    %1103 = vmatpush2.msra.mxu0 0.0
    %1104 = vmatprep.subr.mxu0 0.0
    %1105 = vmatpush2.msra.mxu0 0.0
    %1106 = vmatprep.mubr.f32.mxu0 0.0
    %1107 = vmatmul.mubr.f32.gmra.mxu0 %v1041
    %v1108 = vpop.f32.mrf.mxu0
    %v1109 = vadd.f32 0.0, %v1108
    %v1110 = vpop.f32.mrf.mxu0
    %1111 = vdwg.mxu0
    %v1112 = vmul.f32 %v1109, %v1109
    %v1114 = vrot.slane %v1112, 7
    %v1116 = vsub.f32 %v1109, %v1114
    %v1117 = vmax.f32 %v1116, 0.0
    %v1118 = vadd.f32 %v1117, 1e-05
    %v1119 = vrsqrt.pop %v1118
    %v1120 = vrot.slane %v173, 1
    %v1122 = vmul.f32 %v1119, %v1120
    %v1124 = vrot.slane %v1122, 1
    %v1126 = vmul.f32 %v1109, %v1124
    %v1128 = vrot.slane %v1126, 5
    %v1130 = vsub.f32 %v173, %v1128
    %v1131 = vlaneseq
    %v1132 = vshrl.u32 %v1131, 7
    %v1133 = vsub.s32 1, %v1132
    %v1134 = vrot.slane %v1122, %v1133
    %v1135 = vmul.f32 %v1015, %v1134
    %v1136 = vmul.f32 %v1016, %v1134
    %v1137 = vmul.f32 %v1017, %v1134
    %v1138 = vmul.f32 %v1018, %v1134
    %v1139 = vlaneseq
    %v1140 = vshrl.u32 %v1139, 7
    %v1141 = vsub.s32 3, %v1140
    %v1142 = vrot.slane %v1130, %v1141
    %v1143 = vadd.f32 %v1135, %v1142
    %v1144 = vadd.f32 %v1136, %v1142
    %v1145 = vadd.f32 %v1137, %v1142
    %v1146 = vadd.f32 %v1138, %v1142
    %v1147 = vmax.f32 %v1143, 0.0
    %v1148 = vmax.f32 %v1144, 0.0
    %v1149 = vmax.f32 %v1145, 0.0
    %v1150 = vmax.f32 %v1146, 0.0
    %v1152 = vrot.slane %v1150, 7
    %v1157 = vrot.slane %v1147, 7
    %v1158 = vrot.slane %v1148, 7
    %v1159 = vsel %vm196, %v1157, %v1158
    %v1160 = vrot.slane %v1149, 7
    %v1161 = vsel %vm196, %v1158, %v1160
    %v1162 = vsel %vm196, %v1160, %v1152
    %v1167 = vsel %vm196, %v1152, %v1157
    %v1168 = vmul.f32 %v157, %v1167
    %v1169 = vmul.f32 %v158, %v1159
    %v1170 = vmul.f32 %v159, %v1161
    %v1171 = vmul.f32 %v160, %v1162
    %v1172 = vrot.slane %v1147, 1
    %v1173 = vrot.slane %v1148, 1
    %v1174 = vsel %vm212, %v1172, %v1173
    %v1175 = vrot.slane %v1149, 1
    %v1176 = vsel %vm212, %v1173, %v1175
    %v1177 = vrot.slane %v1150, 1
    %v1178 = vsel %vm212, %v1175, %v1177
    %v1184 = vsel %vm212, %v1177, %v1172
    %v1185 = vmul.f32 %v169, %v1174
    %v1186 = vmul.f32 %v170, %v1176
    %v1187 = vmul.f32 %v171, %v1178
    %v1188 = vmul.f32 %v172, %v1184
    %v1189 = vld [vmem:[#allocation8] sm:$0xff]
    %v1190 = vld [vmem:[#allocation8 + $0x8] sm:$0xff]
    %v1191 = vld [vmem:[#allocation8 + $0x10] sm:$0xff]
    %v1192 = vld [vmem:[#allocation8 + $0x18] sm:$0xff]
    %v1193 = vld [vmem:[#allocation8 + $0x20] sm:$0xff]
    %v1194 = vld [vmem:[#allocation8 + $0x28] sm:$0xff]
    %v1195 = vld [vmem:[#allocation8 + $0x30] sm:$0xff]
    %v1196 = vld [vmem:[#allocation8 + $0x38] sm:$0xff]
    %v1197 = vld [vmem:[#allocation8 + $0x40] sm:$0xff]
    %v1198 = vld [vmem:[#allocation8 + $0x48] sm:$0xff]
    %v1199 = vld [vmem:[#allocation8 + $0x50] sm:$0xff]
    %v1200 = vld [vmem:[#allocation8 + $0x58] sm:$0xff]
    %v1201 = vld [vmem:[#allocation8 + $0x60] sm:$0xff]
    %v1202 = vld [vmem:[#allocation8 + $0x68] sm:$0xff]
    %v1203 = vld [vmem:[#allocation8 + $0x70] sm:$0xff]
    %v1204 = vld [vmem:[#allocation8 + $0x78] sm:$0xff]
    %s1205 = scalar_lea.vmem [#allocation8], 128
    %v1206 = vld [vmem:[%s1205] sm:$0xff]
    %v1207 = vld [vmem:[%s1205 + $0x8] sm:$0xff]
    %v1208 = vld [vmem:[%s1205 + $0x10] sm:$0xff]
    %v1209 = vld [vmem:[%s1205 + $0x18] sm:$0xff]
    %v1210 = vld [vmem:[%s1205 + $0x20] sm:$0xff]
    %v1211 = vld [vmem:[%s1205 + $0x28] sm:$0xff]
    %v1212 = vld [vmem:[%s1205 + $0x30] sm:$0xff]
    %v1213 = vld [vmem:[%s1205 + $0x38] sm:$0xff]
    %v1214 = vld [vmem:[%s1205 + $0x40] sm:$0xff]
    %v1215 = vld [vmem:[%s1205 + $0x48] sm:$0xff]
    %v1216 = vld [vmem:[%s1205 + $0x50] sm:$0xff]
    %v1217 = vld [vmem:[%s1205 + $0x58] sm:$0xff]
    %v1218 = vld [vmem:[%s1205 + $0x60] sm:$0xff]
    %v1219 = vld [vmem:[%s1205 + $0x68] sm:$0xff]
    %v1220 = vld [vmem:[%s1205 + $0x70] sm:$0xff]
    %v1221 = vld [vmem:[%s1205 + $0x78] sm:$0xff]
    %1222 = vmatprep.subr.mxu0 0.0
    %1223 = vmatpush1.msra.mxu0 %v1221
    %1224 = vmatprep.subr.mxu0 0.0
    %1225 = vmatpush1.msra.mxu0 %v1220
    %1226 = vmatprep.subr.mxu0 0.0
    %1227 = vmatpush1.msra.mxu0 %v1219
    %1228 = vmatprep.subr.mxu0 0.0
    %1229 = vmatpush1.msra.mxu0 %v1218
    %1230 = vmatprep.subr.mxu0 0.0
    %1231 = vmatpush1.msra.mxu0 %v1217
    %1232 = vmatprep.subr.mxu0 0.0
    %1233 = vmatpush1.msra.mxu0 %v1216
    %1234 = vmatprep.subr.mxu0 0.0
    %1235 = vmatpush1.msra.mxu0 %v1215
    %1236 = vmatprep.subr.mxu0 0.0
    %1237 = vmatpush1.msra.mxu0 %v1214
    %1238 = vmatprep.subr.mxu0 0.0
    %1239 = vmatpush1.msra.mxu0 %v1213
    %1240 = vmatprep.subr.mxu0 0.0
    %1241 = vmatpush1.msra.mxu0 %v1212
    %1242 = vmatprep.subr.mxu0 0.0
    %1243 = vmatpush1.msra.mxu0 %v1211
    %1244 = vmatprep.subr.mxu0 0.0
    %1245 = vmatpush1.msra.mxu0 %v1210
    %1246 = vmatprep.subr.mxu0 0.0
    %1247 = vmatpush1.msra.mxu0 %v1209
    %1248 = vmatprep.subr.mxu0 0.0
    %1249 = vmatpush1.msra.mxu0 %v1208
    %1250 = vmatprep.subr.mxu0 0.0
    %1251 = vmatpush1.msra.mxu0 %v1207
    %1252 = vmatprep.subr.mxu0 0.0
    %1253 = vmatpush1.msra.mxu0 %v1206
    %1254 = vmatprep.subr.mxu0 0.0
    %1255 = vmatpush2.msra.mxu0 0.0
    %1256 = vmatprep.subr.mxu0 0.0
    %1257 = vmatpush2.msra.mxu0 0.0
    %1258 = vmatprep.subr.mxu0 0.0
    %1259 = vmatpush2.msra.mxu0 0.0
    %1260 = vmatprep.subr.mxu0 0.0
    %1261 = vmatpush2.msra.mxu0 0.0
    %1262 = vmatprep.subr.mxu0 0.0
    %1263 = vmatpush2.msra.mxu0 0.0
    %1264 = vmatprep.subr.mxu0 0.0
    %1265 = vmatpush2.msra.mxu0 0.0
    %1266 = vmatprep.subr.mxu0 0.0
    %1267 = vmatpush2.msra.mxu0 0.0
    %1268 = vmatprep.subr.mxu0 0.0
    %1269 = vmatpush2.msra.mxu0 0.0
    %1270 = vmatprep.subr.mxu0 0.0
    %1271 = vmatpush2.msra.mxu0 0.0
    %1272 = vmatprep.subr.mxu0 0.0
    %1273 = vmatpush2.msra.mxu0 0.0
    %1274 = vmatprep.subr.mxu0 0.0
    %1275 = vmatpush2.msra.mxu0 0.0
    %1276 = vmatprep.subr.mxu0 0.0
    %1277 = vmatpush2.msra.mxu0 0.0
    %1278 = vmatprep.subr.mxu0 0.0
    %1279 = vmatpush2.msra.mxu0 0.0
    %1280 = vmatprep.subr.mxu0 0.0
    %1281 = vmatpush2.msra.mxu0 0.0
    %1282 = vmatprep.subr.mxu0 0.0
    %1283 = vmatpush2.msra.mxu0 0.0
    %1284 = vmatprep.subr.mxu0 0.0
    %1285 = vmatpush2.msra.mxu0 0.0
    %1286 = vmatprep.mubr.f32.mxu0 0.0
    %1287 = vmatmul.mubr.f32.gmra.mxu0 %v1147
    %v1288 = vpop.f32.mrf.mxu0
    %v1289 = vadd.f32 0.0, %v1288
    %v1290 = vpop.f32.mrf.mxu0
    %1291 = vmatprep.mubr.f32.mxu0 0.0
    %1292 = vmatmul.mubr.f32.gmra.mxu0 %v1148
    %v1293 = vpop.f32.mrf.mxu0
    %v1294 = vadd.f32 0.0, %v1293
    %v1295 = vpop.f32.mrf.mxu0
    %1296 = vmatprep.mubr.f32.mxu0 0.0
    %1297 = vmatmul.mubr.f32.gmra.mxu0 %v1149
    %v1298 = vpop.f32.mrf.mxu0
    %v1299 = vadd.f32 0.0, %v1298
    %v1300 = vpop.f32.mrf.mxu0
    %1301 = vmatprep.mubr.f32.mxu0 0.0
    %1302 = vmatmul.mubr.f32.gmra.mxu0 %v1150
    %v1303 = vpop.f32.mrf.mxu0
    %v1304 = vadd.f32 0.0, %v1303
    %v1305 = vpop.f32.mrf.mxu0
    %1306 = vdwg.mxu0
    %1307 = vmatprep.subr.mxu0 0.0
    %1308 = vmatpush1.msra.mxu0 %v1204
    %1309 = vmatprep.subr.mxu0 0.0
    %1310 = vmatpush1.msra.mxu0 %v1203
    %1311 = vmatprep.subr.mxu0 0.0
    %1312 = vmatpush1.msra.mxu0 %v1202
    %1313 = vmatprep.subr.mxu0 0.0
    %1314 = vmatpush1.msra.mxu0 %v1201
    %1315 = vmatprep.subr.mxu0 0.0
    %1316 = vmatpush1.msra.mxu0 %v1200
    %1317 = vmatprep.subr.mxu0 0.0
    %1318 = vmatpush1.msra.mxu0 %v1199
    %1319 = vmatprep.subr.mxu0 0.0
    %1320 = vmatpush1.msra.mxu0 %v1198
    %1321 = vmatprep.subr.mxu0 0.0
    %1322 = vmatpush1.msra.mxu0 %v1197
    %1323 = vmatprep.subr.mxu0 0.0
    %1324 = vmatpush1.msra.mxu0 %v1196
    %1325 = vmatprep.subr.mxu0 0.0
    %1326 = vmatpush1.msra.mxu0 %v1195
    %1327 = vmatprep.subr.mxu0 0.0
    %1328 = vmatpush1.msra.mxu0 %v1194
    %1329 = vmatprep.subr.mxu0 0.0
    %1330 = vmatpush1.msra.mxu0 %v1193
    %1331 = vmatprep.subr.mxu0 0.0
    %1332 = vmatpush1.msra.mxu0 %v1192
    %1333 = vmatprep.subr.mxu0 0.0
    %1334 = vmatpush1.msra.mxu0 %v1191
    %1335 = vmatprep.subr.mxu0 0.0
    %1336 = vmatpush1.msra.mxu0 %v1190
    %1337 = vmatprep.subr.mxu0 0.0
    %1338 = vmatpush1.msra.mxu0 %v1189
    %1339 = vmatprep.subr.mxu0 0.0
    %1340 = vmatpush2.msra.mxu0 0.0
    %1341 = vmatprep.subr.mxu0 0.0
    %1342 = vmatpush2.msra.mxu0 0.0
    %1343 = vmatprep.subr.mxu0 0.0
    %1344 = vmatpush2.msra.mxu0 0.0
    %1345 = vmatprep.subr.mxu0 0.0
    %1346 = vmatpush2.msra.mxu0 0.0
    %1347 = vmatprep.subr.mxu0 0.0
    %1348 = vmatpush2.msra.mxu0 0.0
    %1349 = vmatprep.subr.mxu0 0.0
    %1350 = vmatpush2.msra.mxu0 0.0
    %1351 = vmatprep.subr.mxu0 0.0
    %1352 = vmatpush2.msra.mxu0 0.0
    %1353 = vmatprep.subr.mxu0 0.0
    %1354 = vmatpush2.msra.mxu0 0.0
    %1355 = vmatprep.subr.mxu0 0.0
    %1356 = vmatpush2.msra.mxu0 0.0
    %1357 = vmatprep.subr.mxu0 0.0
    %1358 = vmatpush2.msra.mxu0 0.0
    %1359 = vmatprep.subr.mxu0 0.0
    %1360 = vmatpush2.msra.mxu0 0.0
    %1361 = vmatprep.subr.mxu0 0.0
    %1362 = vmatpush2.msra.mxu0 0.0
    %1363 = vmatprep.subr.mxu0 0.0
    %1364 = vmatpush2.msra.mxu0 0.0
    %1365 = vmatprep.subr.mxu0 0.0
    %1366 = vmatpush2.msra.mxu0 0.0
    %1367 = vmatprep.subr.mxu0 0.0
    %1368 = vmatpush2.msra.mxu0 0.0
    %1369 = vmatprep.subr.mxu0 0.0
    %1370 = vmatpush2.msra.mxu0 0.0
    %1371 = vmatprep.mubr.f32.mxu0 0.0
    %1372 = vmatmul.mubr.f32.gmra.mxu0 %v1168
    %v1373 = vpop.f32.mrf.mxu0
    %v1374 = vadd.f32 %v1289, %v1373
    %v1375 = vpop.f32.mrf.mxu0
    %1376 = vmatprep.mubr.f32.mxu0 0.0
    %1377 = vmatmul.mubr.f32.gmra.mxu0 %v1169
    %v1378 = vpop.f32.mrf.mxu0
    %v1379 = vadd.f32 %v1294, %v1378
    %v1380 = vpop.f32.mrf.mxu0
    %1381 = vmatprep.mubr.f32.mxu0 0.0
    %1382 = vmatmul.mubr.f32.gmra.mxu0 %v1170
    %v1383 = vpop.f32.mrf.mxu0
    %v1384 = vadd.f32 %v1299, %v1383
    %v1385 = vpop.f32.mrf.mxu0
    %1386 = vmatprep.mubr.f32.mxu0 0.0
    %1387 = vmatmul.mubr.f32.gmra.mxu0 %v1171
    %v1388 = vpop.f32.mrf.mxu0
    %v1389 = vadd.f32 %v1304, %v1388
    %v1390 = vpop.f32.mrf.mxu0
    %1391 = vdwg.mxu0
    %s1392 = scalar_lea.vmem [#allocation8], 256
    %v1393 = vld [vmem:[%s1392] sm:$0xff]
    %v1394 = vld [vmem:[%s1392 + $0x8] sm:$0xff]
    %v1395 = vld [vmem:[%s1392 + $0x10] sm:$0xff]
    %v1396 = vld [vmem:[%s1392 + $0x18] sm:$0xff]
    %v1397 = vld [vmem:[%s1392 + $0x20] sm:$0xff]
    %v1398 = vld [vmem:[%s1392 + $0x28] sm:$0xff]
    %v1399 = vld [vmem:[%s1392 + $0x30] sm:$0xff]
    %v1400 = vld [vmem:[%s1392 + $0x38] sm:$0xff]
    %v1401 = vld [vmem:[%s1392 + $0x40] sm:$0xff]
    %v1402 = vld [vmem:[%s1392 + $0x48] sm:$0xff]
    %v1403 = vld [vmem:[%s1392 + $0x50] sm:$0xff]
    %v1404 = vld [vmem:[%s1392 + $0x58] sm:$0xff]
    %v1405 = vld [vmem:[%s1392 + $0x60] sm:$0xff]
    %v1406 = vld [vmem:[%s1392 + $0x68] sm:$0xff]
    %v1407 = vld [vmem:[%s1392 + $0x70] sm:$0xff]
    %v1408 = vld [vmem:[%s1392 + $0x78] sm:$0xff]
    %1409 = vmatprep.subr.mxu0 0.0
    %1410 = vmatpush1.msra.mxu0 %v1408
    %1411 = vmatprep.subr.mxu0 0.0
    %1412 = vmatpush1.msra.mxu0 %v1407
    %1413 = vmatprep.subr.mxu0 0.0
    %1414 = vmatpush1.msra.mxu0 %v1406
    %1415 = vmatprep.subr.mxu0 0.0
    %1416 = vmatpush1.msra.mxu0 %v1405
    %1417 = vmatprep.subr.mxu0 0.0
    %1418 = vmatpush1.msra.mxu0 %v1404
    %1419 = vmatprep.subr.mxu0 0.0
    %1420 = vmatpush1.msra.mxu0 %v1403
    %1421 = vmatprep.subr.mxu0 0.0
    %1422 = vmatpush1.msra.mxu0 %v1402
    %1423 = vmatprep.subr.mxu0 0.0
    %1424 = vmatpush1.msra.mxu0 %v1401
    %1425 = vmatprep.subr.mxu0 0.0
    %1426 = vmatpush1.msra.mxu0 %v1400
    %1427 = vmatprep.subr.mxu0 0.0
    %1428 = vmatpush1.msra.mxu0 %v1399
    %1429 = vmatprep.subr.mxu0 0.0
    %1430 = vmatpush1.msra.mxu0 %v1398
    %1431 = vmatprep.subr.mxu0 0.0
    %1432 = vmatpush1.msra.mxu0 %v1397
    %1433 = vmatprep.subr.mxu0 0.0
    %1434 = vmatpush1.msra.mxu0 %v1396
    %1435 = vmatprep.subr.mxu0 0.0
    %1436 = vmatpush1.msra.mxu0 %v1395
    %1437 = vmatprep.subr.mxu0 0.0
    %1438 = vmatpush1.msra.mxu0 %v1394
    %1439 = vmatprep.subr.mxu0 0.0
    %1440 = vmatpush1.msra.mxu0 %v1393
    %1441 = vmatprep.subr.mxu0 0.0
    %1442 = vmatpush2.msra.mxu0 0.0
    %1443 = vmatprep.subr.mxu0 0.0
    %1444 = vmatpush2.msra.mxu0 0.0
    %1445 = vmatprep.subr.mxu0 0.0
    %1446 = vmatpush2.msra.mxu0 0.0
    %1447 = vmatprep.subr.mxu0 0.0
    %1448 = vmatpush2.msra.mxu0 0.0
    %1449 = vmatprep.subr.mxu0 0.0
    %1450 = vmatpush2.msra.mxu0 0.0
    %1451 = vmatprep.subr.mxu0 0.0
    %1452 = vmatpush2.msra.mxu0 0.0
    %1453 = vmatprep.subr.mxu0 0.0
    %1454 = vmatpush2.msra.mxu0 0.0
    %1455 = vmatprep.subr.mxu0 0.0
    %1456 = vmatpush2.msra.mxu0 0.0
    %1457 = vmatprep.subr.mxu0 0.0
    %1458 = vmatpush2.msra.mxu0 0.0
    %1459 = vmatprep.subr.mxu0 0.0
    %1460 = vmatpush2.msra.mxu0 0.0
    %1461 = vmatprep.subr.mxu0 0.0
    %1462 = vmatpush2.msra.mxu0 0.0
    %1463 = vmatprep.subr.mxu0 0.0
    %1464 = vmatpush2.msra.mxu0 0.0
    %1465 = vmatprep.subr.mxu0 0.0
    %1466 = vmatpush2.msra.mxu0 0.0
    %1467 = vmatprep.subr.mxu0 0.0
    %1468 = vmatpush2.msra.mxu0 0.0
    %1469 = vmatprep.subr.mxu0 0.0
    %1470 = vmatpush2.msra.mxu0 0.0
    %1471 = vmatprep.subr.mxu0 0.0
    %1472 = vmatpush2.msra.mxu0 0.0
    %1473 = vmatprep.mubr.f32.mxu0 0.0
    %1474 = vmatmul.mubr.f32.gmra.mxu0 %v1185
    %v1475 = vpop.f32.mrf.mxu0
    %v1476 = vadd.f32 0.0, %v1475
    %v1477 = vpop.f32.mrf.mxu0
    %1478 = vmatprep.mubr.f32.mxu0 0.0
    %1479 = vmatmul.mubr.f32.gmra.mxu0 %v1186
    %v1480 = vpop.f32.mrf.mxu0
    %v1481 = vadd.f32 0.0, %v1480
    %v1482 = vpop.f32.mrf.mxu0
    %1483 = vmatprep.mubr.f32.mxu0 0.0
    %1484 = vmatmul.mubr.f32.gmra.mxu0 %v1187
    %v1485 = vpop.f32.mrf.mxu0
    %v1486 = vadd.f32 0.0, %v1485
    %v1487 = vpop.f32.mrf.mxu0
    %1488 = vmatprep.mubr.f32.mxu0 0.0
    %1489 = vmatmul.mubr.f32.gmra.mxu0 %v1188
    %v1490 = vpop.f32.mrf.mxu0
    %v1491 = vadd.f32 0.0, %v1490
    %v1492 = vpop.f32.mrf.mxu0
    %1493 = vdwg.mxu0
    %v1494 = vadd.f32 %v1374, %v1476
    %v1495 = vadd.f32 %v1379, %v1481
    %v1496 = vadd.f32 %v1384, %v1486
    %v1497 = vadd.f32 %v1389, %v1491
    %v1498 = vadd.f32 %v1494, %v1495
    %v1499 = vadd.f32 %v1498, %v1496
    %v1500 = vadd.f32 %v1499, %v1497
    %v1501 = vrot.slane %v1500, 4
    %v1502 = vadd.f32 %v1500, %v1501
    %v1503 = vrot.slane %v1502, 2
    %v1504 = vadd.f32 %v1502, %v1503
    %v1505 = vrot.slane %v1504, 1
    %v1506 = vadd.f32 %v1504, %v1505
    %v1507 = vmul.f32 %v1494, %v1494
    %v1508 = vmul.f32 %v1495, %v1495
    %v1509 = vmul.f32 %v1496, %v1496
    %v1510 = vmul.f32 %v1497, %v1497
    %v1511 = vadd.f32 %v1507, %v1508
    %v1512 = vadd.f32 %v1511, %v1509
    %v1513 = vadd.f32 %v1512, %v1510
    %v1514 = vrot.slane %v1513, 4
    %v1515 = vadd.f32 %v1513, %v1514
    %v1516 = vrot.slane %v1515, 2
    %v1517 = vadd.f32 %v1515, %v1516
    %v1518 = vrot.slane %v1517, 1
    %v1519 = vadd.f32 %v1517, %v1518
    %v1520 = vsel %vm196, %v1506, %v1519
    %1521 = vmatprep.subr.mxu0 0.0
    %1522 = vmatpush1.msra.mxu0 %v189
    %1523 = vmatprep.subr.mxu0 0.0
    %1524 = vmatpush1.msra.mxu0 %v188
    %1525 = vmatprep.subr.mxu0 0.0
    %1526 = vmatpush1.msra.mxu0 %v187
    %1527 = vmatprep.subr.mxu0 0.0
    %1528 = vmatpush1.msra.mxu0 %v186
    %1529 = vmatprep.subr.mxu0 0.0
    %1530 = vmatpush1.msra.mxu0 %v185
    %1531 = vmatprep.subr.mxu0 0.0
    %1532 = vmatpush1.msra.mxu0 %v184
    %1533 = vmatprep.subr.mxu0 0.0
    %1534 = vmatpush1.msra.mxu0 %v183
    %1535 = vmatprep.subr.mxu0 0.0
    %1536 = vmatpush1.msra.mxu0 %v182
    %1537 = vmatprep.subr.mxu0 0.0
    %1538 = vmatpush1.msra.mxu0 %v181
    %1539 = vmatprep.subr.mxu0 0.0
    %1540 = vmatpush1.msra.mxu0 %v180
    %1541 = vmatprep.subr.mxu0 0.0
    %1542 = vmatpush1.msra.mxu0 %v179
    %1543 = vmatprep.subr.mxu0 0.0
    %1544 = vmatpush1.msra.mxu0 %v178
    %1545 = vmatprep.subr.mxu0 0.0
    %1546 = vmatpush1.msra.mxu0 %v177
    %1547 = vmatprep.subr.mxu0 0.0
    %1548 = vmatpush1.msra.mxu0 %v176
    %1549 = vmatprep.subr.mxu0 0.0
    %1550 = vmatpush1.msra.mxu0 %v175
    %1551 = vmatprep.subr.mxu0 0.0
    %1552 = vmatpush1.msra.mxu0 %v174
    %1553 = vmatprep.subr.mxu0 0.0
    %1554 = vmatpush2.msra.mxu0 0.0
    %1555 = vmatprep.subr.mxu0 0.0
    %1556 = vmatpush2.msra.mxu0 0.0
    %1557 = vmatprep.subr.mxu0 0.0
    %1558 = vmatpush2.msra.mxu0 0.0
    %1559 = vmatprep.subr.mxu0 0.0
    %1560 = vmatpush2.msra.mxu0 0.0
    %1561 = vmatprep.subr.mxu0 0.0
    %1562 = vmatpush2.msra.mxu0 0.0
    %1563 = vmatprep.subr.mxu0 0.0
    %1564 = vmatpush2.msra.mxu0 0.0
    %1565 = vmatprep.subr.mxu0 0.0
    %1566 = vmatpush2.msra.mxu0 0.0
    %1567 = vmatprep.subr.mxu0 0.0
    %1568 = vmatpush2.msra.mxu0 0.0
    %1569 = vmatprep.subr.mxu0 0.0
    %1570 = vmatpush2.msra.mxu0 0.0
    %1571 = vmatprep.subr.mxu0 0.0
    %1572 = vmatpush2.msra.mxu0 0.0
    %1573 = vmatprep.subr.mxu0 0.0
    %1574 = vmatpush2.msra.mxu0 0.0
    %1575 = vmatprep.subr.mxu0 0.0
    %1576 = vmatpush2.msra.mxu0 0.0
    %1577 = vmatprep.subr.mxu0 0.0
    %1578 = vmatpush2.msra.mxu0 0.0
    %1579 = vmatprep.subr.mxu0 0.0
    %1580 = vmatpush2.msra.mxu0 0.0
    %1581 = vmatprep.subr.mxu0 0.0
    %1582 = vmatpush2.msra.mxu0 0.0
    %1583 = vmatprep.subr.mxu0 0.0
    %1584 = vmatpush2.msra.mxu0 0.0
    %1585 = vmatprep.mubr.f32.mxu0 0.0
    %1586 = vmatmul.mubr.f32.gmra.mxu0 %v1520
    %v1587 = vpop.f32.mrf.mxu0
    %v1588 = vadd.f32 0.0, %v1587
    %v1589 = vpop.f32.mrf.mxu0
    %1590 = vdwg.mxu0
    %v1591 = vmul.f32 %v1588, %v1588
    %v1593 = vrot.slane %v1591, 7
    %v1595 = vsub.f32 %v1588, %v1593
    %v1596 = vmax.f32 %v1595, 0.0
    %v1597 = vadd.f32 %v1596, 1e-05
    %v1598 = vrsqrt.pop %v1597
    %v1599 = vrot.slane %v173, 3
    %v1601 = vmul.f32 %v1598, %v1599
    %v1603 = vrot.slane %v1601, 1
    %v1605 = vmul.f32 %v1588, %v1603
    %v1607 = vrot.slane %v1605, 3
    %v1609 = vsub.f32 %v173, %v1607
    %v1610 = vlaneseq
    %v1611 = vshrl.u32 %v1610, 7
    %v1612 = vsub.s32 1, %v1611
    %v1613 = vrot.slane %v1601, %v1612
    %v1614 = vmul.f32 %v1494, %v1613
    %v1615 = vmul.f32 %v1495, %v1613
    %v1616 = vmul.f32 %v1496, %v1613
    %v1617 = vmul.f32 %v1497, %v1613
    %v1618 = vlaneseq
    %v1619 = vshrl.u32 %v1618, 7
    %v1620 = vsub.s32 5, %v1619
    %v1621 = vrot.slane %v1609, %v1620
    %v1622 = vadd.f32 %v1614, %v1621
    %v1623 = vadd.f32 %v1615, %v1621
    %v1624 = vadd.f32 %v1616, %v1621
    %v1625 = vadd.f32 %v1617, %v1621
    %v1626 = vadd.f32 %v1622, %v92
    %v1627 = vadd.f32 %v1623, %v93
    %v1628 = vadd.f32 %v1624, %v94
    %v1629 = vadd.f32 %v1625, %v95
    %v1630 = vmax.f32 %v1626, 0.0
    %v1631 = vmax.f32 %v1627, 0.0
    %v1632 = vmax.f32 %v1628, 0.0
    %v1633 = vmax.f32 %v1629, 0.0
    %1634 = vst [vmem:[#allocation11] sm:$0xff] %v1630
    %1635 = vst [vmem:[#allocation11 + $0x8] sm:$0xff] %v1631
    %1636 = vst [vmem:[#allocation11 + $0x10] sm:$0xff] %v1632
    %1637 = vst [vmem:[#allocation11 + $0x18] sm:$0xff] %v1633
    // Predicated region
    $region46: #{tpu_custom_call.1} parent=1 // pred_check
      _
    $region47: #{tpu_custom_call.1} parent=1 // pred_check_branch
      %1639 = sbr.rel (0) target = $region49
    $region48: #{tpu_custom_call.1} parent=1 // pred_region
      %s1641 = ssub.s32 512, 512
      %1642 = vsyncadd [#allocation4], %s1641
      %s1643 = sshll.u32 [#allocation11], 4
      %s1644 = int_to_ptr.vmem [resolvable:$true] %s1643
      %1649 = dma.vmem_to_hbm [thread:$0]  %s1644, 512, %s6, [#allocation4], 128, 128, 8
    $region49: #{tpu_custom_call.1} parent=1 // pred_fallthru
      _
    // Predicated region
    $region50: #{tpu_custom_call.1} parent=1 // pred_check
      _
    $region51: #{tpu_custom_call.1} parent=1 // pred_check_branch
      %1651 = sbr.rel (0) target = $region53
    $region52: #{tpu_custom_call.1} parent=1 // pred_region
      %1652 = dma.done [#allocation4], 512
    $region53: #{tpu_custom_call.1} parent=1 // pred_fallthru
      _
    %1653 = vsyncpa [#allocation3], 1
    %1654 = vsyncpa [#allocation6], 1
    %1655 = vsyncpa [#allocation9], 1
    %1656 = vsyncpa [#allocation4], 1

</llo_original>
